<compile_context>
chip_gen: v6e
topology: v6e:2x2x1
jax: 0.10.0
libtpu: 0.0.40
codegen_flags: <defaults>
</compile_context>

<pallas_src>
import functools

import numpy as np
import jax
import jax.numpy as jnp
from jax.experimental import pallas as pl
from jax.experimental.pallas import tpu as pltpu


# ----------------------------- kernel 1 ------------------------------------ #
def _stats_kernel(logits_ref, tgt_ref, inter_ref, card_ref, ce_ref, amax_ref):
    h_id = pl.program_id(1)

    x = logits_ref[0].astype(jnp.float32)            # (C, TH, W)
    t = tgt_ref[...]                                 # (1, TH, W) int32
    num_classes = x.shape[0]

    # Softmax over the class axis; approx reciprocal is safe here because the
    # probas only feed the Dice sums (smooth=1.0) -- CE uses the exact lse.
    m = jnp.max(x, axis=0, keepdims=True)            # (1, TH, W)
    e = jnp.exp(x - m)
    s = jnp.sum(e, axis=0, keepdims=True)
    probas = e * pl.reciprocal(s, approx=True)
    lse = jnp.log(s) + m                             # logsumexp over classes

    cls = jax.lax.broadcasted_iota(jnp.int32, x.shape, 0)
    mask = cls == t                                  # (C, TH, W) bool, no onehot

    # Dice statistics: reference sums over dims=(0, 2) of NCHW (batch and H),
    # keeping per-(class, W) terms.  Sum over TH here; the h grid axis and the
    # host-side sum over N complete the reduction.
    inter_blk = jnp.sum(jnp.where(mask, probas, 0.0), axis=1)          # (C, W)
    card_blk = (jnp.sum(probas, axis=1)
                + jnp.sum(mask.astype(jnp.float32), axis=1))           # (C, W)

    # Cross-entropy partial sum (mean taken on the host).
    tgt_logit = jnp.sum(jnp.where(mask, x, 0.0), axis=0, keepdims=True)
    ce_blk = jnp.sum(lse - tgt_logit)                                  # scalar

    @pl.when(h_id == 0)
    def _():
        inter_ref[...] = jnp.zeros_like(inter_ref)
        card_ref[...] = jnp.zeros_like(card_ref)
        ce_ref[...] = jnp.zeros_like(ce_ref)

    inter_ref[...] = inter_ref[...] + inter_blk[None, :, :]
    card_ref[...] = card_ref[...] + card_blk[None, :, :]
    ce_ref[...] = ce_ref[...] + ce_blk

    # argmax(softmax(x)) over classes == argmax(x); first maximal index.
    # Stored as bf16 (exact class ids for C <= 256) to halve HBM traffic.
    is_max = x == m
    first_max = jnp.min(jnp.where(is_max, cls, num_classes), axis=0)   # (TH, W)
    amax_ref[...] = first_max[None, :, :].astype(jnp.bfloat16)


# ----------------------------- kernel 2 ------------------------------------ #
def _ssim_kernel(p1_ref, tgt_ref, a_ref, b_ref, out_ref, *, c1, c2):
    nb, H, W = p1_ref.shape

    x1 = p1_ref[...]                                  # (nb, H, W) bf16 class map
    x2 = tgt_ref[...].astype(jnp.bfloat16)            # (nb, H, W)
    A = a_ref[...]                                    # (H, H) bf16 trimmed band
    B = b_ref[...]                                    # (W, W) bf16 trimmed band

    # Five blur operands (VPU elementwise).
    ops = (x1, x2, x1 * x1, x2 * x2, x1 * x2)

    # Row blur: per-(operand, image) bf16 MXU dots; only sublane-aligned
    # slices, so no cross-lane restack when W % 128 != 0.
    rows = []
    for op in ops:
        for b in range(nb):
            rows.append(
                jnp.dot(A, op[b], preferred_element_type=jnp.float32)
                .astype(jnp.bfloat16))
    tall = jnp.concatenate(rows, axis=0)              # (5*nb*H, W), sublane concat

    # Column blur: one bf16 MXU dot for all operands and images.
    z = jnp.dot(tall, B, preferred_element_type=jnp.float32)    # (5*nb*H, W) f32

    nbh = nb * H
    mu1 = z[0 * nbh:1 * nbh]
    mu2 = z[1 * nbh:2 * nbh]
    b11 = z[2 * nbh:3 * nbh]
    b22 = z[3 * nbh:4 * nbh]
    b12 = z[4 * nbh:5 * nbh]

    mu1_sq = mu1 * mu1
    mu2_sq = mu2 * mu2
    mu12 = mu1 * mu2
    sigma1 = b11 - mu1_sq
    sigma2 = b22 - mu2_sq
    sigma12 = b12 - mu12

    num = (2.0 * mu12 + c1) * (2.0 * sigma12 + c2)
    den = (mu1_sq + mu2_sq + c1) * (sigma1 + sigma2 + c2)
    ssim_map = num * pl.reciprocal(den, approx=True)
    loss_map = jnp.clip((1.0 - ssim_map) * 0.5, 0.0, 1.0)

    out_ref[...] = jnp.sum(loss_map, keepdims=True)[None]       # (1, 1, 1)


# ----------------------------- host-side glue ------------------------------ #
def _gaussian_1d(window_size, sigma):
    x = np.arange(window_size, dtype=np.float64) - window_size // 2
    g = np.exp(-(x ** 2) / (2.0 * sigma ** 2))
    return (g / g.sum()).astype(np.float32)


def _band_matrices(h, w, window_size, sigma):
    """Trimmed band matrices so blur(X) = A @ X @ B equals the zero-padded
    'same' separable Gaussian convolution (pad rows/cols are zero, so they
    can be dropped from the band matrices)."""
    g = _gaussian_1d(window_size, sigma)
    pad = window_size // 2
    A = np.zeros((h, h), np.float32)
    for k in range(window_size):
        j = np.arange(h) + k - pad
        valid = (j >= 0) & (j < h)
        A[np.arange(h)[valid], j[valid]] += g[k]
    B = np.zeros((w, w), np.float32)
    for k in range(window_size):
        r = np.arange(w) + k - pad
        valid = (r >= 0) & (r < w)
        B[r[valid], np.arange(w)[valid]] += g[k]
    return A, B


def _vmem_limit_bytes():
    """Per-generation scoped VMEM limit: ~5/8 of physical VMEM
    (~40 MiB on v7x's 64 MiB, ~80 MiB on v5e/v6e's 128 MiB)."""
    cap = 64 * 1024 * 1024
    try:
        cap = int(pltpu.get_tpu_info().vmem_capacity_bytes)
    except Exception:
        pass
    return max(32 * 1024 * 1024, min(cap * 5 // 8, 100 * 1024 * 1024))


def _pick_tile_h(c, h, w, itemsize, budget_bytes):
    """Largest h-tile (multiple of 8 dividing h, or h itself) whose
    double-buffered BlockSpec buffers *plus* live in-kernel f32 temporaries
    (~6 arrays of (C, TH, W): x, e, probas, iota, masks/selects) fit the
    VMEM budget."""
    def cost(th):
        logits_blk = c * th * w * itemsize
        tgt_blk = th * w * 4
        amax_blk = th * w * 2                         # bf16 argmax map
        accum = 2 * c * w * 4 + 4
        temps = 6 * c * th * w * 4 + 8 * th * w * 4   # in-kernel live values
        return 2 * (logits_blk + tgt_blk + amax_blk + accum) + temps
    cands = sorted({h} | {t for t in range(8, h, 8) if h % t == 0}, reverse=True)
    for t in cands:
        if cost(t) <= budget_bytes:
            return t
    return cands[-1]


def _pick_ssim_batch(n, h, w, budget_bytes):
    """Images per SSIM grid step: largest divisor of n (capped at 8) whose
    double-buffered blocks + blur temporaries fit the VMEM budget."""
    fixed = 2 * 2 * (h * h + w * w)                   # A, B bf16, double-buffered
    # per image: 2 db'd input blocks (bf16 + i32) + 5 bf16 operands
    # + 5 bf16 row-blurred blocks + 5 f32 blurred maps + ~6 f32 SSIM temps
    per_img = (2 * (2 + 4) + 5 * (2 + 2 + 4) + 6 * 4) * h * w
    best = 1
    for nb in range(1, min(n, 8) + 1):
        if n % nb == 0 and fixed + nb * per_img <= budget_bytes:
            best = nb
    return best


def oh_my_loss(inputs, targets, alpha=0.75, beta=0.25, gamma=0.25, smooth=1.0,
               window_size=11, sigma=1.5, max_val=1.0):
    """inputs: (N, C, H, W) float logits; targets: (N, H, W) int class ids."""
    n, c, h, w = inputs.shape
    targets_i = targets.astype(jnp.int32)

    vmem_limit = _vmem_limit_bytes()
    tile_h = _pick_tile_h(c, h, w, jnp.dtype(inputs.dtype).itemsize, vmem_limit)
    n_ht = h // tile_h

    # ---- kernel 1: softmax / CE / dice stats / argmax, tiled + pipelined ----
    inter, card, ce_sum, amax = pl.pallas_call(
        _stats_kernel,
        grid=(n, n_ht),
        in_specs=[
            pl.BlockSpec((1, c, tile_h, w), lambda i, j: (i, 0, j, 0)),
            pl.BlockSpec((1, tile_h, w), lambda i, j: (i, j, 0)),
        ],
        out_specs=(
            pl.BlockSpec((1, c, w), lambda i, j: (i, 0, 0)),
            pl.BlockSpec((1, c, w), lambda i, j: (i, 0, 0)),
            pl.BlockSpec((1, 1, 1), lambda i, j: (i, 0, 0)),
            pl.BlockSpec((1, tile_h, w), lambda i, j: (i, j, 0)),
        ),
        out_shape=(
            jax.ShapeDtypeStruct((n, c, w), jnp.float32),
            jax.ShapeDtypeStruct((n, c, w), jnp.float32),
            jax.ShapeDtypeStruct((n, 1, 1), jnp.float32),
            jax.ShapeDtypeStruct((n, h, w), jnp.bfloat16),
        ),
        compiler_params=pltpu.CompilerParams(
            dimension_semantics=("parallel", "arbitrary"),
            vmem_limit_bytes=vmem_limit),
    )(inputs, targets_i)

    # DiceLoss: mean over (class, W) of (2*I + s) / (Card + s); loss = 1 - dice.
    inter_t = jnp.sum(inter, axis=0)      # (C, W)
    card_t = jnp.sum(card, axis=0)        # (C, W)
    dice = jnp.mean((2.0 * inter_t + smooth) / (card_t + smooth))
    dice_loss = 1.0 - dice

    # Cross-entropy, reduction='mean', weight=None.
    ce_loss = jnp.sum(ce_sum) / (n * h * w)

    # ---- kernel 2: SSIM(argmax map, targets.float()), no pad round trip ----
    A, B = _band_matrices(h, w, window_size, sigma)
    c1 = (0.01 * max_val) ** 2
    c2 = (0.03 * max_val) ** 2

    nb = _pick_ssim_batch(n, h, w, vmem_limit)
    ssim_sums = pl.pallas_call(
        functools.partial(_ssim_kernel, c1=c1, c2=c2),
        grid=(n // nb,),
        in_specs=[
            pl.BlockSpec((nb, h, w), lambda i: (i, 0, 0)),
            pl.BlockSpec((nb, h, w), lambda i: (i, 0, 0)),
            pl.BlockSpec((h, h), lambda i: (0, 0)),
            pl.BlockSpec((w, w), lambda i: (0, 0)),
        ],
        out_specs=pl.BlockSpec((1, 1, 1), lambda i: (i, 0, 0)),
        out_shape=jax.ShapeDtypeStruct((n // nb, 1, 1), jnp.float32),
        compiler_params=pltpu.CompilerParams(
            dimension_semantics=("parallel",),
            vmem_limit_bytes=vmem_limit),
    )(amax, targets_i,
      jnp.asarray(A, dtype=jnp.bfloat16), jnp.asarray(B, dtype=jnp.bfloat16))

    ssim_loss = jnp.sum(ssim_sums) / (n * h * w)

    return alpha * ce_loss + beta * dice_loss + gamma * ssim_loss


if __name__ == "__main__":
    key = jax.random.PRNGKey(0)
    k1, k2 = jax.random.split(key)
    n, c, h, w = 2, 4, 16, 16
    inputs = jax.random.normal(k1, (n, c, h, w), dtype=jnp.float32)
    targets = jax.random.randint(k2, (n, h, w), 0, c, dtype=jnp.int32)

    loss = jax.jit(oh_my_loss)(inputs, targets)
    jax.block_until_ready(loss)
    print("KERNEL_OK")
</pallas_src>

<mosaic_0001>
module attributes {stable_mosaic.version = 11 : i64} {
  func.func @_stats_kernel(%arg0: i32, %arg1: i32, %arg2: memref<1x4x16x16xf32, #tpu.memory_space<vmem>>, %arg3: memref<1x16x16xi32, #tpu.memory_space<vmem>>, %arg4: memref<1x4x16xf32, #tpu.memory_space<vmem>>, %arg5: memref<1x4x16xf32, #tpu.memory_space<vmem>>, %arg6: memref<1x1x1xf32, #tpu.memory_space<vmem>>, %arg7: memref<1x16x16xbf16, #tpu.memory_space<vmem>>) attributes {dimension_semantics = [#tpu.dimension_semantics<parallel>, #tpu.dimension_semantics<arbitrary>], iteration_bounds = array<i64: 2, 1>, scalar_prefetch = 0 : i64, scratch_operands = 0 : i64, tpu.core_type = #tpu.core_type<tc>, window_params = [{transform_indices = @transform_0, window_bounds = array<i64: 1, 4, 16, 16>}, {transform_indices = @transform_1, window_bounds = array<i64: 1, 16, 16>}, {transform_indices = @transform_2, window_bounds = array<i64: 1, 4, 16>}, {transform_indices = @transform_3, window_bounds = array<i64: 1, 4, 16>}, {transform_indices = @transform_4, window_bounds = array<i64: 1, 1, 1>}, {transform_indices = @transform_5, window_bounds = array<i64: 1, 16, 16>}]} {
    %c0 = arith.constant 0 : index
    %c0_0 = arith.constant 0 : index
    %c0_1 = arith.constant 0 : index
    %c0_2 = arith.constant 0 : index
    %0 = vector.load %arg2[%c0, %c0_0, %c0_1, %c0_2] : memref<1x4x16x16xf32, #tpu.memory_space<vmem>>, vector<1x4x16x16xf32>
    %1 = vector.shape_cast %0 : vector<1x4x16x16xf32> to vector<4x16x16xf32>
    %c0_3 = arith.constant 0 : index
    %c0_4 = arith.constant 0 : index
    %c0_5 = arith.constant 0 : index
    %2 = vector.load %arg3[%c0_3, %c0_4, %c0_5] : memref<1x16x16xi32, #tpu.memory_space<vmem>>, vector<1x16x16xi32>
    %cst = arith.constant dense<0xFF800000> : vector<16x16xf32>
    %3 = vector.multi_reduction <maximumf>, %1, %cst [0] : vector<4x16x16xf32> to vector<16x16xf32>
    %4 = vector.shape_cast %3 : vector<16x16xf32> to vector<1x16x16xf32>
    %5 = vector.broadcast %4 : vector<1x16x16xf32> to vector<4x16x16xf32>
    %6 = arith.subf %1, %5 : vector<4x16x16xf32>
    %7 = math.exp %6 : vector<4x16x16xf32>
    %cst_6 = arith.constant dense<0.000000e+00> : vector<16x16xf32>
    %8 = vector.multi_reduction <add>, %7, %cst_6 [0] : vector<4x16x16xf32> to vector<16x16xf32>
    %9 = vector.shape_cast %8 : vector<16x16xf32> to vector<1x16x16xf32>
    %10 = tpu.reciprocal %9 {approx = true} : vector<1x16x16xf32> -> vector<1x16x16xf32>
    %11 = vector.broadcast %10 : vector<1x16x16xf32> to vector<4x16x16xf32>
    %12 = arith.mulf %7, %11 : vector<4x16x16xf32>
    %13 = math.log %9 : vector<1x16x16xf32>
    %14 = arith.addf %13, %4 : vector<1x16x16xf32>
    %15 = tpu.iota {dimensions = array<i32: 0>} : vector<4x16x16xi32>
    %16 = vector.broadcast %2 : vector<1x16x16xi32> to vector<4x16x16xi32>
    %17 = arith.cmpi eq, %15, %16 : vector<4x16x16xi32>
    %cst_7 = arith.constant 0.000000e+00 : f32
    %18 = vector.broadcast %cst_7 : f32 to vector<4x16x16xf32>
    %19 = arith.select %17, %12, %18 : vector<4x16x16xi1>, vector<4x16x16xf32>
    %cst_8 = arith.constant dense<0.000000e+00> : vector<4x16xf32>
    %20 = vector.multi_reduction <add>, %19, %cst_8 [1] : vector<4x16x16xf32> to vector<4x16xf32>
    %cst_9 = arith.constant dense<0.000000e+00> : vector<4x16xf32>
    %21 = vector.multi_reduction <add>, %12, %cst_9 [1] : vector<4x16x16xf32> to vector<4x16xf32>
    %22 = arith.extui %17 : vector<4x16x16xi1> to vector<4x16x16xi32>
    %23 = arith.sitofp %22 : vector<4x16x16xi32> to vector<4x16x16xf32>
    %cst_10 = arith.constant dense<0.000000e+00> : vector<4x16xf32>
    %24 = vector.multi_reduction <add>, %23, %cst_10 [1] : vector<4x16x16xf32> to vector<4x16xf32>
    %25 = arith.addf %21, %24 : vector<4x16xf32>
    %cst_11 = arith.constant 0.000000e+00 : f32
    %26 = vector.broadcast %cst_11 : f32 to vector<4x16x16xf32>
    %27 = arith.select %17, %1, %26 : vector<4x16x16xi1>, vector<4x16x16xf32>
    %cst_12 = arith.constant dense<0.000000e+00> : vector<16x16xf32>
    %28 = vector.multi_reduction <add>, %27, %cst_12 [0] : vector<4x16x16xf32> to vector<16x16xf32>
    %29 = vector.shape_cast %28 : vector<16x16xf32> to vector<1x16x16xf32>
    %30 = arith.subf %14, %29 : vector<1x16x16xf32>
    %31 = vector.shape_cast %30 : vector<1x16x16xf32> to vector<1x1x16x16xf32>
    %cst_13 = arith.constant dense<0.000000e+00> : vector<1xf32>
    %32 = vector.multi_reduction <add>, %31, %cst_13 [1, 2, 3] : vector<1x1x16x16xf32> to vector<1xf32>
    %33 = vector.shape_cast %32 : vector<1xf32> to vector<1x1x1x1xf32>
    %34 = vector.extract %33[0, 0, 0, 0] : f32 from vector<1x1x1x1xf32>
    %c0_i32 = arith.constant 0 : i32
    %35 = arith.cmpi eq, %arg1, %c0_i32 : i32
    %36 = arith.extui %35 : i1 to i32
    %c0_i32_14 = arith.constant 0 : i32
    %37 = arith.cmpi ne, %36, %c0_i32_14 : i32
    scf.if %37 {
      %cst_37 = arith.constant 0.000000e+00 : f32
      %58 = vector.broadcast %cst_37 : f32 to vector<1x4x16xf32>
      %c0_38 = arith.constant 0 : index
      %c0_39 = arith.constant 0 : index
      %c0_40 = arith.constant 0 : index
      %59 = vector.load %arg4[%c0_38, %c0_39, %c0_40] : memref<1x4x16xf32, #tpu.memory_space<vmem>>, vector<1x4x16xf32>
      tpu.vector_store %arg4[%c0_38, %c0_39, %c0_40], %58 {strides = array<i32>} : memref<1x4x16xf32, #tpu.memory_space<vmem>>, vector<1x4x16xf32>,
      %cst_41 = arith.constant 0.000000e+00 : f32
      %60 = vector.broadcast %cst_41 : f32 to vector<1x4x16xf32>
      %c0_42 = arith.constant 0 : index
      %c0_43 = arith.constant 0 : index
      %c0_44 = arith.constant 0 : index
      %61 = vector.load %arg5[%c0_42, %c0_43, %c0_44] : memref<1x4x16xf32, #tpu.memory_space<vmem>>, vector<1x4x16xf32>
      tpu.vector_store %arg5[%c0_42, %c0_43, %c0_44], %60 {strides = array<i32>} : memref<1x4x16xf32, #tpu.memory_space<vmem>>, vector<1x4x16xf32>,
      %cst_45 = arith.constant 0.000000e+00 : f32
      %62 = vector.broadcast %cst_45 : f32 to vector<1x1x1xf32>
      %c0_46 = arith.constant 0 : index
      %c0_47 = arith.constant 0 : index
      %c0_48 = arith.constant 0 : index
      %63 = vector.load %arg6[%c0_46, %c0_47, %c0_48] : memref<1x1x1xf32, #tpu.memory_space<vmem>>, vector<1x1x1xf32>
      tpu.vector_store %arg6[%c0_46, %c0_47, %c0_48], %62 {strides = array<i32>} : memref<1x1x1xf32, #tpu.memory_space<vmem>>, vector<1x1x1xf32>,
    } else {
    }
    %c0_15 = arith.constant 0 : index
    %c0_16 = arith.constant 0 : index
    %c0_17 = arith.constant 0 : index
    %38 = vector.load %arg4[%c0_15, %c0_16, %c0_17] : memref<1x4x16xf32, #tpu.memory_space<vmem>>, vector<1x4x16xf32>
    %39 = vector.shape_cast %20 : vector<4x16xf32> to vector<1x4x16xf32>
    %40 = arith.addf %38, %39 : vector<1x4x16xf32>
    %c0_18 = arith.constant 0 : index
    %c0_19 = arith.constant 0 : index
    %c0_20 = arith.constant 0 : index
    %41 = vector.load %arg4[%c0_18, %c0_19, %c0_20] : memref<1x4x16xf32, #tpu.memory_space<vmem>>, vector<1x4x16xf32>
    tpu.vector_store %arg4[%c0_18, %c0_19, %c0_20], %40 {strides = array<i32>} : memref<1x4x16xf32, #tpu.memory_space<vmem>>, vector<1x4x16xf32>,
    %c0_21 = arith.constant 0 : index
    %c0_22 = arith.constant 0 : index
    %c0_23 = arith.constant 0 : index
    %42 = vector.load %arg5[%c0_21, %c0_22, %c0_23] : memref<1x4x16xf32, #tpu.memory_space<vmem>>, vector<1x4x16xf32>
    %43 = vector.shape_cast %25 : vector<4x16xf32> to vector<1x4x16xf32>
    %44 = arith.addf %42, %43 : vector<1x4x16xf32>
    %c0_24 = arith.constant 0 : index
    %c0_25 = arith.constant 0 : index
    %c0_26 = arith.constant 0 : index
    %45 = vector.load %arg5[%c0_24, %c0_25, %c0_26] : memref<1x4x16xf32, #tpu.memory_space<vmem>>, vector<1x4x16xf32>
    tpu.vector_store %arg5[%c0_24, %c0_25, %c0_26], %44 {strides = array<i32>} : memref<1x4x16xf32, #tpu.memory_space<vmem>>, vector<1x4x16xf32>,
    %c0_27 = arith.constant 0 : index
    %c0_28 = arith.constant 0 : index
    %c0_29 = arith.constant 0 : index
    %46 = vector.load %arg6[%c0_27, %c0_28, %c0_29] : memref<1x1x1xf32, #tpu.memory_space<vmem>>, vector<1x1x1xf32>
    %47 = vector.broadcast %34 : f32 to vector<1x1x1xf32>
    %48 = arith.addf %46, %47 : vector<1x1x1xf32>
    %c0_30 = arith.constant 0 : index
    %c0_31 = arith.constant 0 : index
    %c0_32 = arith.constant 0 : index
    %49 = vector.load %arg6[%c0_30, %c0_31, %c0_32] : memref<1x1x1xf32, #tpu.memory_space<vmem>>, vector<1x1x1xf32>
    tpu.vector_store %arg6[%c0_30, %c0_31, %c0_32], %48 {strides = array<i32>} : memref<1x1x1xf32, #tpu.memory_space<vmem>>, vector<1x1x1xf32>,
    %50 = vector.broadcast %4 : vector<1x16x16xf32> to vector<4x16x16xf32>
    %51 = arith.cmpf oeq, %1, %50 : vector<4x16x16xf32>
    %c4_i32 = arith.constant 4 : i32
    %52 = vector.broadcast %c4_i32 : i32 to vector<4x16x16xi32>
    %53 = arith.select %51, %15, %52 : vector<4x16x16xi1>, vector<4x16x16xi32>
    %cst_33 = arith.constant dense<2147483647> : vector<16x16xi32>
    %54 = vector.multi_reduction <minsi>, %53, %cst_33 [0] : vector<4x16x16xi32> to vector<16x16xi32>
    %55 = vector.shape_cast %54 : vector<16x16xi32> to vector<1x16x16xi32>
    %56 = arith.sitofp %55 : vector<1x16x16xi32> to vector<1x16x16xbf16>
    %c0_34 = arith.constant 0 : index
    %c0_35 = arith.constant 0 : index
    %c0_36 = arith.constant 0 : index
    %57 = vector.load %arg7[%c0_34, %c0_35, %c0_36] : memref<1x16x16xbf16, #tpu.memory_space<vmem>>, vector<1x16x16xbf16>
    tpu.vector_store %arg7[%c0_34, %c0_35, %c0_36], %56 {strides = array<i32>} : memref<1x16x16xbf16, #tpu.memory_space<vmem>>, vector<1x16x16xbf16>,
    return
  }
  func.func @transform_0(%arg0: i32, %arg1: i32) -> (i32, i32, i32, i32) {
    %c0_i32 = arith.constant 0 : i32
    %c0_i32_0 = arith.constant 0 : i32
    %c0_i32_1 = arith.constant 0 : i32
    return %arg0, %c0_i32, %arg1, %c0_i32_0 : i32, i32, i32, i32
  }
  func.func @transform_1(%arg0: i32, %arg1: i32) -> (i32, i32, i32) {
    %c0_i32 = arith.constant 0 : i32
    %c0_i32_0 = arith.constant 0 : i32
    return %arg0, %arg1, %c0_i32 : i32, i32, i32
  }
  func.func @transform_2(%arg0: i32, %arg1: i32) -> (i32, i32, i32) {
    %c0_i32 = arith.constant 0 : i32
    %c0_i32_0 = arith.constant 0 : i32
    %c0_i32_1 = arith.constant 0 : i32
    return %arg0, %c0_i32, %c0_i32_0 : i32, i32, i32
  }
  func.func @transform_3(%arg0: i32, %arg1: i32) -> (i32, i32, i32) {
    %c0_i32 = arith.constant 0 : i32
    %c0_i32_0 = arith.constant 0 : i32
    %c0_i32_1 = arith.constant 0 : i32
    return %arg0, %c0_i32, %c0_i32_0 : i32, i32, i32
  }
  func.func @transform_4(%arg0: i32, %arg1: i32) -> (i32, i32, i32) {
    %c0_i32 = arith.constant 0 : i32
    %c0_i32_0 = arith.constant 0 : i32
    %c0_i32_1 = arith.constant 0 : i32
    return %arg0, %c0_i32, %c0_i32_0 : i32, i32, i32
  }
  func.func @transform_5(%arg0: i32, %arg1: i32) -> (i32, i32, i32) {
    %c0_i32 = arith.constant 0 : i32
    %c0_i32_0 = arith.constant 0 : i32
    return %arg0, %arg1, %c0_i32 : i32, i32, i32
  }
}

module attributes {stable_mosaic.version = 11 : i64} {
  func.func @_ssim_kernel(%arg0: i32, %arg1: memref<2x16x16xbf16, #tpu.memory_space<vmem>>, %arg2: memref<2x16x16xi32, #tpu.memory_space<vmem>>, %arg3: memref<16x16xbf16, #tpu.memory_space<vmem>>, %arg4: memref<16x16xbf16, #tpu.memory_space<vmem>>, %arg5: memref<1x1x1xf32, #tpu.memory_space<vmem>>) attributes {dimension_semantics = [#tpu.dimension_semantics<parallel>], iteration_bounds = array<i64: 1>, scalar_prefetch = 0 : i64, scratch_operands = 0 : i64, tpu.core_type = #tpu.core_type<tc>, window_params = [{transform_indices = @transform_0, window_bounds = array<i64: 2, 16, 16>}, {transform_indices = @transform_1, window_bounds = array<i64: 2, 16, 16>}, {pipeline_mode = #tpu.pipeline_mode<synchronous>, transform_indices = @transform_2, window_bounds = array<i64: 16, 16>}, {pipeline_mode = #tpu.pipeline_mode<synchronous>, transform_indices = @transform_3, window_bounds = array<i64: 16, 16>}, {transform_indices = @transform_4, window_bounds = array<i64: 1, 1, 1>}]} {
    %c0 = arith.constant 0 : index
    %c0_0 = arith.constant 0 : index
    %c0_1 = arith.constant 0 : index
    %0 = vector.load %arg1[%c0, %c0_0, %c0_1] : memref<2x16x16xbf16, #tpu.memory_space<vmem>>, vector<2x16x16xbf16>
    %c0_2 = arith.constant 0 : index
    %c0_3 = arith.constant 0 : index
    %c0_4 = arith.constant 0 : index
    %1 = vector.load %arg2[%c0_2, %c0_3, %c0_4] : memref<2x16x16xi32, #tpu.memory_space<vmem>>, vector<2x16x16xi32>
    %2 = arith.sitofp %1 : vector<2x16x16xi32> to vector<2x16x16xbf16>
    %c0_5 = arith.constant 0 : index
    %c0_6 = arith.constant 0 : index
    %3 = vector.load %arg3[%c0_5, %c0_6] : memref<16x16xbf16, #tpu.memory_space<vmem>>, vector<16x16xbf16>
    %c0_7 = arith.constant 0 : index
    %c0_8 = arith.constant 0 : index
    %4 = vector.load %arg4[%c0_7, %c0_8] : memref<16x16xbf16, #tpu.memory_space<vmem>>, vector<16x16xbf16>
    %5 = arith.mulf %0, %0 : vector<2x16x16xbf16>
    %6 = arith.mulf %2, %2 : vector<2x16x16xbf16>
    %7 = arith.mulf %0, %2 : vector<2x16x16xbf16>
    %8 = vector.extract_strided_slice %0 {offsets = [0, 0, 0], sizes = [1, 16, 16], strides = [1, 1, 1]} : vector<2x16x16xbf16> to vector<1x16x16xbf16>
    %9 = vector.shape_cast %8 : vector<1x16x16xbf16> to vector<16x16xbf16>
    %cst = arith.constant dense<0.000000e+00> : vector<16x16xf32>
    %10 = tpu.matmul %3, %9, %cst {dimension_numbers = #tpu.dot_dimension_numbers<[1], [0], [0], [1], [0, 0, 1, 1], [], []>} : vector<16x16xbf16>, vector<16x16xbf16>, vector<16x16xf32> -> vector<16x16xf32>
    %11 = arith.truncf %10 : vector<16x16xf32> to vector<16x16xbf16>
    %12 = vector.extract_strided_slice %0 {offsets = [1, 0, 0], sizes = [1, 16, 16], strides = [1, 1, 1]} : vector<2x16x16xbf16> to vector<1x16x16xbf16>
    %13 = vector.shape_cast %12 : vector<1x16x16xbf16> to vector<16x16xbf16>
    %cst_9 = arith.constant dense<0.000000e+00> : vector<16x16xf32>
    %14 = tpu.matmul %3, %13, %cst_9 {dimension_numbers = #tpu.dot_dimension_numbers<[1], [0], [0], [1], [0, 0, 1, 1], [], []>} : vector<16x16xbf16>, vector<16x16xbf16>, vector<16x16xf32> -> vector<16x16xf32>
    %15 = arith.truncf %14 : vector<16x16xf32> to vector<16x16xbf16>
    %16 = vector.extract_strided_slice %2 {offsets = [0, 0, 0], sizes = [1, 16, 16], strides = [1, 1, 1]} : vector<2x16x16xbf16> to vector<1x16x16xbf16>
    %17 = vector.shape_cast %16 : vector<1x16x16xbf16> to vector<16x16xbf16>
    %cst_10 = arith.constant dense<0.000000e+00> : vector<16x16xf32>
    %18 = tpu.matmul %3, %17, %cst_10 {dimension_numbers = #tpu.dot_dimension_numbers<[1], [0], [0], [1], [0, 0, 1, 1], [], []>} : vector<16x16xbf16>, vector<16x16xbf16>, vector<16x16xf32> -> vector<16x16xf32>
    %19 = arith.truncf %18 : vector<16x16xf32> to vector<16x16xbf16>
    %20 = vector.extract_strided_slice %2 {offsets = [1, 0, 0], sizes = [1, 16, 16], strides = [1, 1, 1]} : vector<2x16x16xbf16> to vector<1x16x16xbf16>
    %21 = vector.shape_cast %20 : vector<1x16x16xbf16> to vector<16x16xbf16>
    %cst_11 = arith.constant dense<0.000000e+00> : vector<16x16xf32>
    %22 = tpu.matmul %3, %21, %cst_11 {dimension_numbers = #tpu.dot_dimension_numbers<[1], [0], [0], [1], [0, 0, 1, 1], [], []>} : vector<16x16xbf16>, vector<16x16xbf16>, vector<16x16xf32> -> vector<16x16xf32>
    %23 = arith.truncf %22 : vector<16x16xf32> to vector<16x16xbf16>
    %24 = vector.extract_strided_slice %5 {offsets = [0, 0, 0], sizes = [1, 16, 16], strides = [1, 1, 1]} : vector<2x16x16xbf16> to vector<1x16x16xbf16>
    %25 = vector.shape_cast %24 : vector<1x16x16xbf16> to vector<16x16xbf16>
    %cst_12 = arith.constant dense<0.000000e+00> : vector<16x16xf32>
    %26 = tpu.matmul %3, %25, %cst_12 {dimension_numbers = #tpu.dot_dimension_numbers<[1], [0], [0], [1], [0, 0, 1, 1], [], []>} : vector<16x16xbf16>, vector<16x16xbf16>, vector<16x16xf32> -> vector<16x16xf32>
    %27 = arith.truncf %26 : vector<16x16xf32> to vector<16x16xbf16>
    %28 = vector.extract_strided_slice %5 {offsets = [1, 0, 0], sizes = [1, 16, 16], strides = [1, 1, 1]} : vector<2x16x16xbf16> to vector<1x16x16xbf16>
    %29 = vector.shape_cast %28 : vector<1x16x16xbf16> to vector<16x16xbf16>
    %cst_13 = arith.constant dense<0.000000e+00> : vector<16x16xf32>
    %30 = tpu.matmul %3, %29, %cst_13 {dimension_numbers = #tpu.dot_dimension_numbers<[1], [0], [0], [1], [0, 0, 1, 1], [], []>} : vector<16x16xbf16>, vector<16x16xbf16>, vector<16x16xf32> -> vector<16x16xf32>
    %31 = arith.truncf %30 : vector<16x16xf32> to vector<16x16xbf16>
    %32 = vector.extract_strided_slice %6 {offsets = [0, 0, 0], sizes = [1, 16, 16], strides = [1, 1, 1]} : vector<2x16x16xbf16> to vector<1x16x16xbf16>
    %33 = vector.shape_cast %32 : vector<1x16x16xbf16> to vector<16x16xbf16>
    %cst_14 = arith.constant dense<0.000000e+00> : vector<16x16xf32>
    %34 = tpu.matmul %3, %33, %cst_14 {dimension_numbers = #tpu.dot_dimension_numbers<[1], [0], [0], [1], [0, 0, 1, 1], [], []>} : vector<16x16xbf16>, vector<16x16xbf16>, vector<16x16xf32> -> vector<16x16xf32>
    %35 = arith.truncf %34 : vector<16x16xf32> to vector<16x16xbf16>
    %36 = vector.extract_strided_slice %6 {offsets = [1, 0, 0], sizes = [1, 16, 16], strides = [1, 1, 1]} : vector<2x16x16xbf16> to vector<1x16x16xbf16>
    %37 = vector.shape_cast %36 : vector<1x16x16xbf16> to vector<16x16xbf16>
    %cst_15 = arith.constant dense<0.000000e+00> : vector<16x16xf32>
    %38 = tpu.matmul %3, %37, %cst_15 {dimension_numbers = #tpu.dot_dimension_numbers<[1], [0], [0], [1], [0, 0, 1, 1], [], []>} : vector<16x16xbf16>, vector<16x16xbf16>, vector<16x16xf32> -> vector<16x16xf32>
    %39 = arith.truncf %38 : vector<16x16xf32> to vector<16x16xbf16>
    %40 = vector.extract_strided_slice %7 {offsets = [0, 0, 0], sizes = [1, 16, 16], strides = [1, 1, 1]} : vector<2x16x16xbf16> to vector<1x16x16xbf16>
    %41 = vector.shape_cast %40 : vector<1x16x16xbf16> to vector<16x16xbf16>
    %cst_16 = arith.constant dense<0.000000e+00> : vector<16x16xf32>
    %42 = tpu.matmul %3, %41, %cst_16 {dimension_numbers = #tpu.dot_dimension_numbers<[1], [0], [0], [1], [0, 0, 1, 1], [], []>} : vector<16x16xbf16>, vector<16x16xbf16>, vector<16x16xf32> -> vector<16x16xf32>
    %43 = arith.truncf %42 : vector<16x16xf32> to vector<16x16xbf16>
    %44 = vector.extract_strided_slice %7 {offsets = [1, 0, 0], sizes = [1, 16, 16], strides = [1, 1, 1]} : vector<2x16x16xbf16> to vector<1x16x16xbf16>
    %45 = vector.shape_cast %44 : vector<1x16x16xbf16> to vector<16x16xbf16>
    %cst_17 = arith.constant dense<0.000000e+00> : vector<16x16xf32>
    %46 = tpu.matmul %3, %45, %cst_17 {dimension_numbers = #tpu.dot_dimension_numbers<[1], [0], [0], [1], [0, 0, 1, 1], [], []>} : vector<16x16xbf16>, vector<16x16xbf16>, vector<16x16xf32> -> vector<16x16xf32>
    %47 = arith.truncf %46 : vector<16x16xf32> to vector<16x16xbf16>
    %48 = tpu.concatenate %11, %15, %19, %23, %27, %31, %35, %39, %43, %47 in 0 : vector<16x16xbf16>, vector<16x16xbf16>, vector<16x16xbf16>, vector<16x16xbf16>, vector<16x16xbf16>, vector<16x16xbf16>, vector<16x16xbf16>, vector<16x16xbf16>, vector<16x16xbf16>, vector<16x16xbf16> -> vector<160x16xbf16>
    %cst_18 = arith.constant dense<0.000000e+00> : vector<160x16xf32>
    %49 = tpu.matmul %48, %4, %cst_18 {dimension_numbers = #tpu.dot_dimension_numbers<[1], [0], [0], [1], [0, 0, 1, 1], [], []>} : vector<160x16xbf16>, vector<16x16xbf16>, vector<160x16xf32> -> vector<160x16xf32>
    %50 = vector.extract_strided_slice %49 {offsets = [0, 0], sizes = [32, 16], strides = [1, 1]} : vector<160x16xf32> to vector<32x16xf32>
    %51 = vector.extract_strided_slice %49 {offsets = [32, 0], sizes = [32, 16], strides = [1, 1]} : vector<160x16xf32> to vector<32x16xf32>
    %52 = vector.extract_strided_slice %49 {offsets = [64, 0], sizes = [32, 16], strides = [1, 1]} : vector<160x16xf32> to vector<32x16xf32>
    %53 = vector.extract_strided_slice %49 {offsets = [96, 0], sizes = [32, 16], strides = [1, 1]} : vector<160x16xf32> to vector<32x16xf32>
    %54 = vector.extract_strided_slice %49 {offsets = [128, 0], sizes = [32, 16], strides = [1, 1]} : vector<160x16xf32> to vector<32x16xf32>
    %55 = arith.mulf %50, %50 : vector<32x16xf32>
    %56 = arith.mulf %51, %51 : vector<32x16xf32>
    %57 = arith.mulf %50, %51 : vector<32x16xf32>
    %58 = arith.subf %52, %55 : vector<32x16xf32>
    %59 = arith.subf %53, %56 : vector<32x16xf32>
    %60 = arith.subf %54, %57 : vector<32x16xf32>
    %cst_19 = arith.constant 2.000000e+00 : f32
    %61 = vector.broadcast %cst_19 : f32 to vector<32x16xf32>
    %62 = arith.mulf %61, %57 : vector<32x16xf32>
    %cst_20 = arith.constant 9.99999974E-5 : f32
    %63 = vector.broadcast %cst_20 : f32 to vector<32x16xf32>
    %64 = arith.addf %62, %63 : vector<32x16xf32>
    %cst_21 = arith.constant 2.000000e+00 : f32
    %65 = vector.broadcast %cst_21 : f32 to vector<32x16xf32>
    %66 = arith.mulf %65, %60 : vector<32x16xf32>
    %cst_22 = arith.constant 8.99999984E-4 : f32
    %67 = vector.broadcast %cst_22 : f32 to vector<32x16xf32>
    %68 = arith.addf %66, %67 : vector<32x16xf32>
    %69 = arith.mulf %64, %68 : vector<32x16xf32>
    %70 = arith.addf %55, %56 : vector<32x16xf32>
    %cst_23 = arith.constant 9.99999974E-5 : f32
    %71 = vector.broadcast %cst_23 : f32 to vector<32x16xf32>
    %72 = arith.addf %70, %71 : vector<32x16xf32>
    %73 = arith.addf %58, %59 : vector<32x16xf32>
    %cst_24 = arith.constant 8.99999984E-4 : f32
    %74 = vector.broadcast %cst_24 : f32 to vector<32x16xf32>
    %75 = arith.addf %73, %74 : vector<32x16xf32>
    %76 = arith.mulf %72, %75 : vector<32x16xf32>
    %77 = tpu.reciprocal %76 {approx = true} : vector<32x16xf32> -> vector<32x16xf32>
    %78 = arith.mulf %69, %77 : vector<32x16xf32>
    %cst_25 = arith.constant 1.000000e+00 : f32
    %79 = vector.broadcast %cst_25 : f32 to vector<32x16xf32>
    %80 = arith.subf %79, %78 : vector<32x16xf32>
    %cst_26 = arith.constant 5.000000e-01 : f32
    %81 = vector.broadcast %cst_26 : f32 to vector<32x16xf32>
    %82 = arith.mulf %80, %81 : vector<32x16xf32>
    %cst_27 = arith.constant 0.000000e+00 : f32
    %cst_28 = arith.constant 1.000000e+00 : f32
    %83 = vector.broadcast %cst_27 : f32 to vector<32x16xf32>
    %84 = arith.maximumf %83, %82 : vector<32x16xf32>
    %85 = vector.broadcast %cst_28 : f32 to vector<32x16xf32>
    %86 = arith.minimumf %85, %84 : vector<32x16xf32>
    %87 = vector.shape_cast %86 : vector<32x16xf32> to vector<1x32x16xf32>
    %cst_29 = arith.constant dense<0.000000e+00> : vector<1xf32>
    %88 = vector.multi_reduction <add>, %87, %cst_29 [1, 2] : vector<1x32x16xf32> to vector<1xf32>
    %89 = vector.shape_cast %88 : vector<1xf32> to vector<1x1x1xf32>
    %90 = vector.extract %89[0, 0, 0] : f32 from vector<1x1x1xf32>
    %91 = vector.broadcast %90 : f32 to vector<1x1xf32>
    %92 = vector.shape_cast %91 : vector<1x1xf32> to vector<1x1x1xf32>
    %c0_30 = arith.constant 0 : index
    %c0_31 = arith.constant 0 : index
    %c0_32 = arith.constant 0 : index
    %93 = vector.load %arg5[%c0_30, %c0_31, %c0_32] : memref<1x1x1xf32, #tpu.memory_space<vmem>>, vector<1x1x1xf32>
    tpu.vector_store %arg5[%c0_30, %c0_31, %c0_32], %92 {strides = array<i32>} : memref<1x1x1xf32, #tpu.memory_space<vmem>>, vector<1x1x1xf32>,
    return
  }
  func.func @transform_0(%arg0: i32) -> (i32, i32, i32) {
    %c0_i32 = arith.constant 0 : i32
    %c0_i32_0 = arith.constant 0 : i32
    %c0_i32_1 = arith.constant 0 : i32
    return %arg0, %c0_i32, %c0_i32_0 : i32, i32, i32
  }
  func.func @transform_1(%arg0: i32) -> (i32, i32, i32) {
    %c0_i32 = arith.constant 0 : i32
    %c0_i32_0 = arith.constant 0 : i32
    %c0_i32_1 = arith.constant 0 : i32
    return %arg0, %c0_i32, %c0_i32_0 : i32, i32, i32
  }
  func.func @transform_2(%arg0: i32) -> (i32, i32) {
    %c0_i32 = arith.constant 0 : i32
    %c0_i32_0 = arith.constant 0 : i32
    %c0_i32_1 = arith.constant 0 : i32
    return %c0_i32, %c0_i32_0 : i32, i32
  }
  func.func @transform_3(%arg0: i32) -> (i32, i32) {
    %c0_i32 = arith.constant 0 : i32
    %c0_i32_0 = arith.constant 0 : i32
    %c0_i32_1 = arith.constant 0 : i32
    return %c0_i32, %c0_i32_0 : i32, i32
  }
  func.func @transform_4(%arg0: i32) -> (i32, i32, i32) {
    %c0_i32 = arith.constant 0 : i32
    %c0_i32_0 = arith.constant 0 : i32
    %c0_i32_1 = arith.constant 0 : i32
    return %arg0, %c0_i32, %c0_i32_0 : i32, i32, i32
  }
}

</mosaic_0001>

<llo_original>
// kernel: oh_my_loss.2
$region0: #{oh_my_loss.2}
  #allocation0 [shape = 'u32[]', space=smem, size = 0x4, offset = 0x4, fixed_abs, tag = 'smem constant byte address 0x4 - core index']
  #allocation1 [shape = 'u32[144,128]{1,0:T(1,128)}', space=vmem, size = 0x12000, scoped, tag = 'internal scratch']
  %s0 = inlined_call_operand.hbm [shape: f32[2,4,16,16], index: 0, kind: input, shape index: {}]
  %s1 = inlined_call_operand.hbm [shape: s32[2,16,16], index: 1, kind: input, shape index: {}]
  %s2 = inlined_call_operand.vmem [shape: f32[2,4,16], index: 2, kind: output, shape index: {0}]
  %s3 = inlined_call_operand.vmem [shape: f32[2,4,16], index: 3, kind: output, shape index: {1}]
  %s4 = inlined_call_operand.vmem [shape: f32[2,1,1], index: 4, kind: output, shape index: {2}]
  %s5 = inlined_call_operand.vmem [shape: bf16[2,16,16], index: 5, kind: output, shape index: {3}]
  %6 = xla_tuple %s2, %s3, %s4, %s5
  %s7 = sld [smem:[#allocation0]]
  $region77: #{oh_my_loss.2} parent=0
    _
  %s9 = ssub.s32 1, %s7
  %s10 = scalar_select 0, %s9, %s7
  $region1: #{oh_my_loss.2} parent=0
    #allocation2 [shape = 'u8[65536]{0}', space=vmem, size = 0x10000, scoped, tag = 'input window, operand 0']
    #allocation3 [shape = 's32[2]{0}', space=sflag, size = 0x8, scoped, tag = 'scoped memory for oh_my_loss.2']
    #allocation4 [shape = 'u8[16384]{0}', space=vmem, size = 0x4000, scoped, tag = 'input window, operand 1']
    #allocation5 [shape = 's32[2]{0}', space=sflag, size = 0x8, scoped, tag = 'scoped memory for oh_my_loss.2']
    %11 = vsyncpa [#allocation3], 0
    %s12 = scalar_lea.sflag [#allocation3], 1
    %13 = vsyncpa %s12, 0
    %14 = vsyncpa [#allocation5], 0
    %s15 = scalar_lea.sflag [#allocation5], 1
    %16 = vsyncpa %s15, 0
    loop: start=0, step=1, limit=4
    $region2: #{oh_my_loss.2} parent=1 // loop_pre_header
      _
    $region3: #{oh_my_loss.2} parent=1 // loop_header
      %s18 = sphi 0, %s22
      %p19 = scmp.ge.s32.totalorder %s18, 4
      %s25 = sphi 0, %s37
      %s26 = sphi 0, %s33
      %s27 = sphi 0, %s25
      %s28 = sphi 0, %s26
      %s29 = sphi 0, %s27
      %s30 = sphi 0, %s28
      %s42 = sphi 0, %s44
      %s45 = sphi 0, %s42
      %s46 = sphi 0, %s45
      %s62 = sphi 0, %s46
      %s70 = sphi 0, %s72
      %s73 = sphi 0, %s70
      %s74 = sphi 0, %s73
      %s90 = sphi 0, %s74
      %s96 = sphi 0, %s98
      %s99 = sphi 0, %s96
      %s100 = sphi 0, %s99
      %s116 = sphi 0, %s100
      %s122 = sphi 0, %s124
      %s125 = sphi 0, %s122
      %s126 = sphi 0, %s125
      %s142 = sphi 0, %s126
      %s148 = sphi 0, %s150
      %s151 = sphi 0, %s148
      %s152 = sphi 0, %s151
      %s168 = sphi 0, %s152
      %s176 = sphi 0, %s178
      %s179 = sphi 0, %s176
      %s180 = sphi 0, %s179
      %s196 = sphi 0, %s180
    $region4: #{oh_my_loss.2} parent=1 // loop_header_branch
      %21 = sbr.rel (%p19) target = $region8
    $region5: #{oh_my_loss.2} parent=1 // loop_body
      %s23 = ssub.s32 %s18, 1
      %s24 = ssub.s32 %s18, 2
      %s31 = sadd.s32 1, %s26
      %p32 = scmp.ge.s32.totalorder %s31, 1
      %s33 = scalar_select %p32, 0, %s31
      %s34 = sadd.s32 1, %s25
      %s35 = scalar_select %p32, %s34, %s25
      %p36 = scmp.ge.s32.totalorder %s35, 2
      %s37 = scalar_select %p36, 0, %s35
      %s38 = ssub.s32 %s25, %s37
      %s39 = ssub.s32 %s26, %s33
      %s40 = sor.u32 %s38, %s39
      %p41 = scmp.eq.s32.totalorder %s40, 0
      %s43 = sadd.s32 %s42, 1
      %s44 = scalar_select %p41, %s42, %s43
      %p47 = pneg %p41
      %p48 = scmp.eq.s32.totalorder %s18, 1
      %p49 = por %p47, %p48
      %p50 = scmp.ne.s32.totalorder %s42, %s45
      %p51 = scmp.eq.s32.totalorder %s18, 0
      %p52 = por %p50, %p51
      %p53 = scmp.ne.s32.totalorder %s42, %s45
      %p54 = scmp.eq.s32.totalorder %s23, 1
      %p55 = por %p53, %p54
      %p56 = scmp.ne.s32.totalorder %s45, %s46
      %p57 = scmp.eq.s32.totalorder %s23, 0
      %p58 = por %p56, %p57
      %p59 = scmp.ne.s32.totalorder %s45, %s46
      %p60 = scmp.eq.s32.totalorder %s24, 1
      %p61 = por %p59, %p60
      %p63 = scmp.ne.s32.totalorder %s46, %s62
      %p64 = scmp.eq.s32.totalorder %s24, 0
      %p65 = por %p63, %p64
      %s66 = ssub.s32 %s25, %s37
      %s67 = ssub.s32 %s26, %s33
      %s68 = sor.u32 %s66, %s67
      %p69 = scmp.eq.s32.totalorder %s68, 0
      %s71 = sadd.s32 %s70, 1
      %s72 = scalar_select %p69, %s70, %s71
      %p75 = pneg %p69
      %p76 = scmp.eq.s32.totalorder %s18, 1
      %p77 = por %p75, %p76
      %p78 = scmp.ne.s32.totalorder %s70, %s73
      %p79 = scmp.eq.s32.totalorder %s18, 0
      %p80 = por %p78, %p79
      %p81 = scmp.ne.s32.totalorder %s70, %s73
      %p82 = scmp.eq.s32.totalorder %s23, 1
      %p83 = por %p81, %p82
      %p84 = scmp.ne.s32.totalorder %s73, %s74
      %p85 = scmp.eq.s32.totalorder %s23, 0
      %p86 = por %p84, %p85
      %p87 = scmp.ne.s32.totalorder %s73, %s74
      %p88 = scmp.eq.s32.totalorder %s24, 1
      %p89 = por %p87, %p88
      %p91 = scmp.ne.s32.totalorder %s74, %s90
      %p92 = scmp.eq.s32.totalorder %s24, 0
      %p93 = por %p91, %p92
      %s94 = ssub.s32 %s25, %s37
      %p95 = scmp.eq.s32.totalorder %s94, 0
      %s97 = sadd.s32 %s96, 1
      %s98 = scalar_select %p95, %s96, %s97
      %p101 = pneg %p95
      %p102 = scmp.eq.s32.totalorder %s18, 1
      %p103 = por %p101, %p102
      %p104 = scmp.ne.s32.totalorder %s96, %s99
      %p105 = scmp.eq.s32.totalorder %s18, 0
      %p106 = por %p104, %p105
      %p107 = scmp.ne.s32.totalorder %s96, %s99
      %p108 = scmp.eq.s32.totalorder %s23, 1
      %p109 = por %p107, %p108
      %p110 = scmp.ne.s32.totalorder %s99, %s100
      %p111 = scmp.eq.s32.totalorder %s23, 0
      %p112 = por %p110, %p111
      %p113 = scmp.ne.s32.totalorder %s99, %s100
      %p114 = scmp.eq.s32.totalorder %s24, 1
      %p115 = por %p113, %p114
      %p117 = scmp.ne.s32.totalorder %s100, %s116
      %p118 = scmp.eq.s32.totalorder %s24, 0
      %p119 = por %p117, %p118
      %s120 = ssub.s32 %s25, %s37
      %p121 = scmp.eq.s32.totalorder %s120, 0
      %s123 = sadd.s32 %s122, 1
      %s124 = scalar_select %p121, %s122, %s123
      %p127 = pneg %p121
      %p128 = scmp.eq.s32.totalorder %s18, 1
      %p129 = por %p127, %p128
      %p130 = scmp.ne.s32.totalorder %s122, %s125
      %p131 = scmp.eq.s32.totalorder %s18, 0
      %p132 = por %p130, %p131
      %p133 = scmp.ne.s32.totalorder %s122, %s125
      %p134 = scmp.eq.s32.totalorder %s23, 1
      %p135 = por %p133, %p134
      %p136 = scmp.ne.s32.totalorder %s125, %s126
      %p137 = scmp.eq.s32.totalorder %s23, 0
      %p138 = por %p136, %p137
      %p139 = scmp.ne.s32.totalorder %s125, %s126
      %p140 = scmp.eq.s32.totalorder %s24, 1
      %p141 = por %p139, %p140
      %p143 = scmp.ne.s32.totalorder %s126, %s142
      %p144 = scmp.eq.s32.totalorder %s24, 0
      %p145 = por %p143, %p144
      %s146 = ssub.s32 %s25, %s37
      %p147 = scmp.eq.s32.totalorder %s146, 0
      %s149 = sadd.s32 %s148, 1
      %s150 = scalar_select %p147, %s148, %s149
      %p153 = pneg %p147
      %p154 = scmp.eq.s32.totalorder %s18, 1
      %p155 = por %p153, %p154
      %p156 = scmp.ne.s32.totalorder %s148, %s151
      %p157 = scmp.eq.s32.totalorder %s18, 0
      %p158 = por %p156, %p157
      %p159 = scmp.ne.s32.totalorder %s148, %s151
      %p160 = scmp.eq.s32.totalorder %s23, 1
      %p161 = por %p159, %p160
      %p162 = scmp.ne.s32.totalorder %s151, %s152
      %p163 = scmp.eq.s32.totalorder %s23, 0
      %p164 = por %p162, %p163
      %p165 = scmp.ne.s32.totalorder %s151, %s152
      %p166 = scmp.eq.s32.totalorder %s24, 1
      %p167 = por %p165, %p166
      %p169 = scmp.ne.s32.totalorder %s152, %s168
      %p170 = scmp.eq.s32.totalorder %s24, 0
      %p171 = por %p169, %p170
      %s172 = ssub.s32 %s25, %s37
      %s173 = ssub.s32 %s26, %s33
      %s174 = sor.u32 %s172, %s173
      %p175 = scmp.eq.s32.totalorder %s174, 0
      %s177 = sadd.s32 %s176, 1
      %s178 = scalar_select %p175, %s176, %s177
      %p181 = pneg %p175
      %p182 = scmp.eq.s32.totalorder %s18, 1
      %p183 = por %p181, %p182
      %p184 = scmp.ne.s32.totalorder %s176, %s179
      %p185 = scmp.eq.s32.totalorder %s18, 0
      %p186 = por %p184, %p185
      %p187 = scmp.ne.s32.totalorder %s176, %s179
      %p188 = scmp.eq.s32.totalorder %s23, 1
      %p189 = por %p187, %p188
      %p190 = scmp.ne.s32.totalorder %s179, %s180
      %p191 = scmp.eq.s32.totalorder %s23, 0
      %p192 = por %p190, %p191
      %p193 = scmp.ne.s32.totalorder %s179, %s180
      %p194 = scmp.eq.s32.totalorder %s24, 1
      %p195 = por %p193, %p194
      %p197 = scmp.ne.s32.totalorder %s180, %s196
      %p198 = scmp.eq.s32.totalorder %s24, 0
      %p199 = por %p197, %p198
      %p200 = scmp.le.s32.totalorder 1, %s18
      %p201 = scmp.lt.s32.totalorder %s18, 3
      %p202 = pnand %p200, %p201
      %p203 = pneg %p202
      // Predicated region
      $region9: #{oh_my_loss.2} parent=5 // pred_check
        _
      $region10: #{oh_my_loss.2} parent=5 // pred_check_branch
        %205 = sbr.rel (%p202) target = $region12
      $region11: #{oh_my_loss.2} parent=5 // pred_region
        %s206 = ssub.s32 %s18, 1
      $region12: #{oh_my_loss.2} parent=5 // pred_fallthru
        _
      %p207 = scmp.lt.s32.totalorder %s18, 2
      // Predicated region
      $region13: #{oh_my_loss.2} parent=5 // pred_check
        %p208 = pneg %p207
      $region14: #{oh_my_loss.2} parent=5 // pred_check_branch
        %210 = sbr.rel (%p208) target = $region16
      $region15: #{oh_my_loss.2} parent=5 // pred_region
        // Predicated region
        $region17: #{oh_my_loss.2} parent=15 // pred_check
          %p211 = pneg %p52
        $region18: #{oh_my_loss.2} parent=15 // pred_check_branch
          %213 = sbr.rel (%p211) target = $region20
        $region19: #{oh_my_loss.2} parent=15 // pred_region
          %s214 = sand.u32 %s42, 1
          %s215 = scalar_lea.sflag [#allocation3], %s214
          %s216 = sand.u32 %s42, 1
          %s217 = smul.addr %s216, 64
          %s218 = scalar_lea.vmem [#allocation2], %s217
          %s219 = smul.u32 2, %s26
          %s221 = ssub.s32 1024, 1024
          %222 = vsyncadd %s215, %s221
          %s223 = smul.addr %s25, 8
          %s224 = sadd.s32 %s219, %s223
          %s225 = smul.addr %s224, 128
          %s226 = scalar_lea.hbm %s0, %s225
          %s227 = sshll.u32 %s218, 4
          %s228 = int_to_ptr.vmem [resolvable:$true] %s227
          %233 = dma.hbm_to_vmem [thread:$0]  %s226, 1024, %s228, %s215, 128, 128, 8
        $region20: #{oh_my_loss.2} parent=15 // pred_fallthru
          _
        // Predicated region
        $region21: #{oh_my_loss.2} parent=15 // pred_check
          %p234 = pneg %p80
        $region22: #{oh_my_loss.2} parent=15 // pred_check_branch
          %236 = sbr.rel (%p234) target = $region24
        $region23: #{oh_my_loss.2} parent=15 // pred_region
          %s237 = sand.u32 %s70, 1
          %s238 = scalar_lea.sflag [#allocation5], %s237
          %s239 = sand.u32 %s70, 1
          %s240 = smul.addr %s239, 16
          %s241 = scalar_lea.vmem [#allocation4], %s240
          %s242 = smul.u32 2, %s26
          %s244 = ssub.s32 256, 256
          %245 = vsyncadd %s238, %s244
          %s246 = smul.addr %s25, 2
          %s247 = sadd.s32 %s242, %s246
          %s248 = smul.addr %s247, 128
          %s249 = scalar_lea.hbm %s1, %s248
          %s250 = sshll.u32 %s241, 4
          %s251 = int_to_ptr.vmem [resolvable:$true] %s250
          %256 = dma.hbm_to_vmem [thread:$0]  %s249, 256, %s251, %s238, 128, 128, 8
        $region24: #{oh_my_loss.2} parent=15 // pred_fallthru
          _
      $region16: #{oh_my_loss.2} parent=5 // pred_fallthru
        _
      %p257 = scmp.le.s32.totalorder 1, %s18
      %p258 = scmp.lt.s32.totalorder %s18, 3
      %p259 = pnand %p257, %p258
      %p260 = pneg %p259
      // Predicated region
      $region25: #{oh_my_loss.2} parent=5 // pred_check
        _
      $region26: #{oh_my_loss.2} parent=5 // pred_check_branch
        %262 = sbr.rel (%p259) target = $region28
      $region27: #{oh_my_loss.2} parent=5 // pred_region
        %s263 = ssub.s32 %s18, 1
        %s264 = sand.u32 %s45, 1
        %s265 = scalar_lea.sflag [#allocation3], %s264
        %s266 = sand.u32 %s45, 1
        %s267 = smul.addr %s266, 64
        %s268 = scalar_lea.vmem [#allocation2], %s267
        // Predicated region
        $region29: #{oh_my_loss.2} parent=27 // pred_check
          %p269 = pneg %p58
        $region30: #{oh_my_loss.2} parent=27 // pred_check_branch
          %271 = sbr.rel (%p269) target = $region32
        $region31: #{oh_my_loss.2} parent=27 // pred_region
          %272 = dma.done %s265, 1024
        $region32: #{oh_my_loss.2} parent=27 // pred_fallthru
          _
        %s273 = sand.u32 %s73, 1
        %s274 = scalar_lea.sflag [#allocation5], %s273
        %s275 = sand.u32 %s73, 1
        %s276 = smul.addr %s275, 16
        %s277 = scalar_lea.vmem [#allocation4], %s276
        // Predicated region
        $region33: #{oh_my_loss.2} parent=27 // pred_check
          %p278 = pneg %p86
        $region34: #{oh_my_loss.2} parent=27 // pred_check_branch
          %280 = sbr.rel (%p278) target = $region36
        $region35: #{oh_my_loss.2} parent=27 // pred_region
          %281 = dma.done %s274, 256
        $region36: #{oh_my_loss.2} parent=27 // pred_fallthru
          _
        %s282 = sand.u32 %s45, 1
        %s283 = scalar_lea.sflag [#allocation3], %s282
        %s284 = sand.u32 %s45, 1
        %s285 = smul.addr %s284, 64
        %s286 = scalar_lea.vmem [#allocation2], %s285
        %p287 = pneg %p58
        %p288 = pneg %p55
        %s289 = sand.u32 %s73, 1
        %s290 = scalar_lea.sflag [#allocation5], %s289
        %s291 = sand.u32 %s73, 1
        %s292 = smul.addr %s291, 16
        %s293 = scalar_lea.vmem [#allocation4], %s292
        %p294 = pneg %p86
        %p295 = pneg %p83
        %p296 = pneg %p112
        %p297 = pneg %p109
        %p298 = scmp.lt.s32.totalorder %s27, 1
        %s299 = scalar_select %p298, %s27, 1
        %s300 = smul.addr %s299, 4
        %s301 = scalar_lea.vmem %s2, %s300
        %p302 = pneg %p138
        %p303 = pneg %p135
        %p304 = scmp.lt.s32.totalorder %s27, 1
        %s305 = scalar_select %p304, %s27, 1
        %s306 = smul.addr %s305, 4
        %s307 = scalar_lea.vmem %s3, %s306
        %p308 = pneg %p164
        %p309 = pneg %p161
        %p310 = scmp.lt.s32.totalorder %s27, 1
        %s311 = scalar_select %p310, %s27, 1
        %s312 = scalar_lea.vmem %s4, %s311
        %p313 = pneg %p192
        %p314 = pneg %p189
        %s315 = smul.u32 2, %s28
        %p316 = scmp.lt.s32.totalorder %s27, 1
        %s317 = scalar_select %p316, %s27, 1
        %p318 = scmp.lt.s32.totalorder %s315, 1
        %s319 = scalar_select %p318, %s315, 1
        %s320 = smul.addr %s317, 2
        %s321 = sadd.s32 %s319, %s320
        %s322 = smul.addr %s321, 4
        %s323 = scalar_lea.vmem %s5, %s322
        %s324 = smul.u32 2, %s28
        %s325 = smul.u32 2, %s28
        %p326 = scmp.lt.s32.totalorder %s27, 1
        %s327 = scalar_select %p326, %s27, 1
        %s328 = smul.addr %s327, 4
        %s329 = scalar_lea.vmem %s2, %s328
        %p330 = scmp.lt.s32.totalorder %s27, 1
        %s331 = scalar_select %p330, %s27, 1
        %s332 = smul.addr %s331, 4
        %s333 = scalar_lea.vmem %s3, %s332
        %p334 = scmp.lt.s32.totalorder %s27, 1
        %s335 = scalar_select %p334, %s27, 1
        %s336 = scalar_lea.vmem %s4, %s335
        %s337 = smul.u32 2, %s28
        %p338 = scmp.lt.s32.totalorder %s27, 1
        %s339 = scalar_select %p338, %s27, 1
        %p340 = scmp.lt.s32.totalorder %s337, 1
        %s341 = scalar_select %p340, %s337, 1
        %s342 = smul.addr %s339, 2
        %s343 = sadd.s32 %s341, %s342
        %s344 = smul.addr %s343, 4
        %s345 = scalar_lea.vmem %s5, %s344
        %s346 = smul.u32 2, %s28
        %v347 = vld [vmem:[%s268] sm:$0xff]
        %v348 = vld [vmem:[%s268 + $0x8] sm:$0xff]
        %v349 = vld [vmem:[%s268 + $0x10] sm:$0xff]
        %v350 = vld [vmem:[%s268 + $0x18] sm:$0xff]
        %v351 = vld [vmem:[%s268 + $0x20] sm:$0xff]
        %v352 = vld [vmem:[%s268 + $0x28] sm:$0xff]
        %v353 = vld [vmem:[%s268 + $0x30] sm:$0xff]
        %v354 = vld [vmem:[%s268 + $0x38] sm:$0xff]
        %v355 = vld [vmem:[%s277] sm:$0xff]
        %v356 = vld [vmem:[%s277 + $0x8] sm:$0xff]
        %vm357 = vcmask 130048
        %v358 = vsel %vm357, %v347, -inf
        %v359 = vsel %vm357, %v349, -inf
        %v360 = vsel %vm357, %v351, -inf
        %v361 = vmax.f32 %v358, %v360
        %v362 = vsel %vm357, %v353, -inf
        %v363 = vmax.f32 %v359, %v362
        %v364 = vmax.f32 %v361, %v363
        %v365 = vsel %vm357, %v348, -inf
        %v366 = vsel %vm357, %v350, -inf
        %v367 = vsel %vm357, %v352, -inf
        %v368 = vmax.f32 %v365, %v367
        %v369 = vsel %vm357, %v354, -inf
        %v370 = vmax.f32 %v366, %v369
        %v371 = vmax.f32 %v368, %v370
        %v372 = vsub.f32 %v347, %v364
        %v373 = vsub.f32 %v348, %v371
        %v374 = vsub.f32 %v349, %v364
        %v375 = vsub.f32 %v350, %v371
        %v376 = vsub.f32 %v351, %v364
        %v377 = vsub.f32 %v352, %v371
        %v378 = vsub.f32 %v353, %v364
        %v379 = vsub.f32 %v354, %v371
        %v380 = vmul.f32 %v372, 1.442695
        %v381 = vpow.pop %v380
        %v382 = vmul.f32 %v373, 1.442695
        %v383 = vpow.pop %v382
        %v384 = vmul.f32 %v374, 1.442695
        %v385 = vpow.pop %v384
        %v386 = vmul.f32 %v375, 1.442695
        %v387 = vpow.pop %v386
        %v388 = vmul.f32 %v376, 1.442695
        %v389 = vpow.pop %v388
        %v390 = vmul.f32 %v377, 1.442695
        %v391 = vpow.pop %v390
        %v392 = vmul.f32 %v378, 1.442695
        %v393 = vpow.pop %v392
        %v394 = vmul.f32 %v379, 1.442695
        %v395 = vpow.pop %v394
        %v396 = vsel %vm357, %v381, 0.0
        %v397 = vsel %vm357, %v385, 0.0
        %v398 = vadd.f32 %v396, %v397
        %v399 = vsel %vm357, %v389, 0.0
        %v400 = vadd.f32 %v398, %v399
        %v401 = vsel %vm357, %v393, 0.0
        %v402 = vadd.f32 %v400, %v401
        %v403 = vsel %vm357, %v383, 0.0
        %v404 = vsel %vm357, %v387, 0.0
        %v405 = vadd.f32 %v403, %v404
        %v406 = vsel %vm357, %v391, 0.0
        %v407 = vadd.f32 %v405, %v406
        %v408 = vsel %vm357, %v395, 0.0
        %v409 = vadd.f32 %v407, %v408
        %v410 = vrcp.pop %v402
        %v411 = vrcp.pop %v409
        %v412 = vmul.f32 %v381, %v410
        %v413 = vmul.f32 %v383, %v411
        %v414 = vmul.f32 %v385, %v410
        %v415 = vmul.f32 %v387, %v411
        %v416 = vmul.f32 %v389, %v410
        %v417 = vmul.f32 %v391, %v411
        %v418 = vmul.f32 %v393, %v410
        %v419 = vmul.f32 %v395, %v411
        %v420 = vlog2.pop %v402
        %v421 = vmul.f32 %v420, 0.6931472
        %v422 = vlog2.pop %v409
        %v423 = vmul.f32 %v422, 0.6931472
        %v424 = vadd.f32 %v421, %v364
        %v425 = vadd.f32 %v423, %v371
        %vm426 = vcmp.eq.s32.totalorder %v355, 0
        %vm427 = vcmp.eq.s32.totalorder %v356, 0
        %vm428 = vcmp.eq.s32.totalorder %v355, 1
        %vm429 = vcmp.eq.s32.totalorder %v356, 1
        %vm430 = vcmp.eq.s32.totalorder %v355, 2
        %vm431 = vcmp.eq.s32.totalorder %v356, 2
        %vm432 = vcmp.eq.s32.totalorder %v355, 3
        %vm433 = vcmp.eq.s32.totalorder %v356, 3
        %v434 = vsel %vm426, %v412, 0.0
        %v435 = vsel %vm427, %v413, 0.0
        %v436 = vsel %vm428, %v414, 0.0
        %v437 = vsel %vm429, %v415, 0.0
        %v438 = vsel %vm430, %v416, 0.0
        %v439 = vsel %vm431, %v417, 0.0
        %v440 = vsel %vm432, %v418, 0.0
        %v441 = vsel %vm433, %v419, 0.0
        %v442 = vsel %vm357, %v434, 0.0
        %v443 = vsel %vm357, %v435, 0.0
        %v444 = vadd.f32 %v442, %v443
        %v445 = vrot.slane %v444, 4
        %v446 = vadd.f32 %v444, %v445
        %v447 = vrot.slane %v446, 2
        %v448 = vadd.f32 %v446, %v447
        %v449 = vrot.slane %v448, 1
        %v450 = vadd.f32 %v448, %v449
        %v451 = vsel %vm357, %v436, 0.0
        %v452 = vsel %vm357, %v437, 0.0
        %v453 = vadd.f32 %v451, %v452
        %v454 = vrot.slane %v453, 4
        %v455 = vadd.f32 %v453, %v454
        %v456 = vrot.slane %v455, 2
        %v457 = vadd.f32 %v455, %v456
        %v458 = vrot.slane %v457, 1
        %v459 = vadd.f32 %v457, %v458
        %v460 = vsel %vm357, %v438, 0.0
        %v461 = vsel %vm357, %v439, 0.0
        %v462 = vadd.f32 %v460, %v461
        %v463 = vrot.slane %v462, 4
        %v464 = vadd.f32 %v462, %v463
        %v465 = vrot.slane %v464, 2
        %v466 = vadd.f32 %v464, %v465
        %v467 = vrot.slane %v466, 1
        %v468 = vadd.f32 %v466, %v467
        %v469 = vsel %vm357, %v440, 0.0
        %v470 = vsel %vm357, %v441, 0.0
        %v471 = vadd.f32 %v469, %v470
        %v472 = vrot.slane %v471, 4
        %v473 = vadd.f32 %v471, %v472
        %v474 = vrot.slane %v473, 2
        %v475 = vadd.f32 %v473, %v474
        %v476 = vrot.slane %v475, 1
        %v477 = vadd.f32 %v475, %v476
        %v478 = vsel %vm357, %v412, 0.0
        %v479 = vsel %vm357, %v413, 0.0
        %v480 = vadd.f32 %v478, %v479
        %v481 = vrot.slane %v480, 4
        %v482 = vadd.f32 %v480, %v481
        %v483 = vrot.slane %v482, 2
        %v484 = vadd.f32 %v482, %v483
        %v485 = vrot.slane %v484, 1
        %v486 = vadd.f32 %v484, %v485
        %v487 = vsel %vm357, %v414, 0.0
        %v488 = vsel %vm357, %v415, 0.0
        %v489 = vadd.f32 %v487, %v488
        %v490 = vrot.slane %v489, 4
        %v491 = vadd.f32 %v489, %v490
        %v492 = vrot.slane %v491, 2
        %v493 = vadd.f32 %v491, %v492
        %v494 = vrot.slane %v493, 1
        %v495 = vadd.f32 %v493, %v494
        %v496 = vsel %vm357, %v416, 0.0
        %v497 = vsel %vm357, %v417, 0.0
        %v498 = vadd.f32 %v496, %v497
        %v499 = vrot.slane %v498, 4
        %v500 = vadd.f32 %v498, %v499
        %v501 = vrot.slane %v500, 2
        %v502 = vadd.f32 %v500, %v501
        %v503 = vrot.slane %v502, 1
        %v504 = vadd.f32 %v502, %v503
        %v505 = vsel %vm357, %v418, 0.0
        %v506 = vsel %vm357, %v419, 0.0
        %v507 = vadd.f32 %v505, %v506
        %v508 = vrot.slane %v507, 4
        %v509 = vadd.f32 %v507, %v508
        %v510 = vrot.slane %v509, 2
        %v511 = vadd.f32 %v509, %v510
        %v512 = vrot.slane %v511, 1
        %v513 = vadd.f32 %v511, %v512
        %v514 = vsel %vm426, 1, 0
        %v515 = vsel %vm427, 1, 0
        %v516 = vsel %vm428, 1, 0
        %v517 = vsel %vm429, 1, 0
        %v518 = vsel %vm430, 1, 0
        %v519 = vsel %vm431, 1, 0
        %v520 = vsel %vm432, 1, 0
        %v521 = vsel %vm433, 1, 0
        %v522 = vcvt.s32.f32 %v514
        %v523 = vcvt.s32.f32 %v515
        %v524 = vcvt.s32.f32 %v516
        %v525 = vcvt.s32.f32 %v517
        %v526 = vcvt.s32.f32 %v518
        %v527 = vcvt.s32.f32 %v519
        %v528 = vcvt.s32.f32 %v520
        %v529 = vcvt.s32.f32 %v521
        %v530 = vsel %vm357, %v522, 0.0
        %v531 = vsel %vm357, %v523, 0.0
        %v532 = vadd.f32 %v530, %v531
        %v533 = vrot.slane %v532, 4
        %v534 = vadd.f32 %v532, %v533
        %v535 = vrot.slane %v534, 2
        %v536 = vadd.f32 %v534, %v535
        %v537 = vrot.slane %v536, 1
        %v538 = vadd.f32 %v536, %v537
        %v539 = vsel %vm357, %v524, 0.0
        %v540 = vsel %vm357, %v525, 0.0
        %v541 = vadd.f32 %v539, %v540
        %v542 = vrot.slane %v541, 4
        %v543 = vadd.f32 %v541, %v542
        %v544 = vrot.slane %v543, 2
        %v545 = vadd.f32 %v543, %v544
        %v546 = vrot.slane %v545, 1
        %v547 = vadd.f32 %v545, %v546
        %v548 = vsel %vm357, %v526, 0.0
        %v549 = vsel %vm357, %v527, 0.0
        %v550 = vadd.f32 %v548, %v549
        %v551 = vrot.slane %v550, 4
        %v552 = vadd.f32 %v550, %v551
        %v553 = vrot.slane %v552, 2
        %v554 = vadd.f32 %v552, %v553
        %v555 = vrot.slane %v554, 1
        %v556 = vadd.f32 %v554, %v555
        %v557 = vsel %vm357, %v528, 0.0
        %v558 = vsel %vm357, %v529, 0.0
        %v559 = vadd.f32 %v557, %v558
        %v560 = vrot.slane %v559, 4
        %v561 = vadd.f32 %v559, %v560
        %v562 = vrot.slane %v561, 2
        %v563 = vadd.f32 %v561, %v562
        %v564 = vrot.slane %v563, 1
        %v565 = vadd.f32 %v563, %v564
        %v566 = vadd.f32 %v486, %v538
        %v567 = vadd.f32 %v495, %v547
        %v568 = vadd.f32 %v504, %v556
        %v569 = vadd.f32 %v513, %v565
        %v570 = vsel %vm426, %v347, 0.0
        %v571 = vsel %vm427, %v348, 0.0
        %v572 = vsel %vm428, %v349, 0.0
        %v573 = vsel %vm429, %v350, 0.0
        %v574 = vsel %vm430, %v351, 0.0
        %v575 = vsel %vm431, %v352, 0.0
        %v576 = vsel %vm432, %v353, 0.0
        %v577 = vsel %vm433, %v354, 0.0
        %v578 = vsel %vm357, %v570, 0.0
        %v579 = vsel %vm357, %v572, 0.0
        %v580 = vadd.f32 %v578, %v579
        %v581 = vsel %vm357, %v574, 0.0
        %v582 = vadd.f32 %v580, %v581
        %v583 = vsel %vm357, %v576, 0.0
        %v584 = vadd.f32 %v582, %v583
        %v585 = vsel %vm357, %v571, 0.0
        %v586 = vsel %vm357, %v573, 0.0
        %v587 = vadd.f32 %v585, %v586
        %v588 = vsel %vm357, %v575, 0.0
        %v589 = vadd.f32 %v587, %v588
        %v590 = vsel %vm357, %v577, 0.0
        %v591 = vadd.f32 %v589, %v590
        %v592 = vsub.f32 %v424, %v584
        %v593 = vsub.f32 %v425, %v591
        %v594 = vsel %vm357, %v592, 0.0
        %v595 = vsel %vm357, %v593, 0.0
        %v596 = vadd.f32 %v594, %v595
        %597 = vadd.xlane.f32.xlu0 %v596
        %v598 = vpop.xlane.xlu0 %597
        %v599 = vrot.slane %v598, 4
        %v600 = vadd.f32 %v598, %v599
        %v601 = vrot.slane %v600, 2
        %v602 = vadd.f32 %v600, %v601
        %v603 = vrot.slane %v602, 1
        %v604 = vadd.f32 %v602, %v603
        %s605 = vtos %v604
        %p606 = scmp.eq.s32.totalorder %s28, 0
        // Predicated region
        $region37: #{oh_my_loss.2} parent=27 // pred_check
          %p607 = pneg %p606
        $region38: #{oh_my_loss.2} parent=27 // pred_check_branch
          %609 = sbr.rel (%p607) target = $region40
        $region39: #{oh_my_loss.2} parent=27 // pred_region
          %vm610 = vcmask 125952
          %611 = vst.msk [vmem:[%s329] sm:$0xf] %vm610, 0.0
          %612 = vst.msk [vmem:[%s333] sm:$0xf] %vm610, 0.0
          %vm613 = vcmask 0
          %614 = vst.msk [vmem:[%s336] sm:$0x1] %vm613, 0.0
        $region40: #{oh_my_loss.2} parent=27 // pred_fallthru
          _
        %v615 = vld [vmem:[%s329] sm:$0xf]
        %vm620 = vcmask 1041409
        %v621 = vsel %vm620, %v459, %v450
        %vm622 = vcmask 1042434
        %v623 = vsel %vm622, %v468, %v621
        %vm624 = vcmask 1043459
        %v625 = vsel %vm624, %v477, %v623
        %v627 = vadd.f32 %v615, %v625
        %vm628 = vcmask 125952
        %629 = vst.msk [vmem:[%s329] sm:$0xf] %vm628, %v627
        %v630 = vld [vmem:[%s333] sm:$0xf]
        %v635 = vsel %vm620, %v567, %v566
        %v636 = vsel %vm622, %v568, %v635
        %v637 = vsel %vm624, %v569, %v636
        %v639 = vadd.f32 %v630, %v637
        %640 = vst.msk [vmem:[%s333] sm:$0xf] %vm628, %v639
        %v641 = vld [vmem:[%s336] sm:$0x1]
        %v642 = vstv %s605
        %v643 = vadd.f32 %v641, %v642
        %vm644 = vcmask 0
        %645 = vst.msk [vmem:[%s336] sm:$0x1] %vm644, %v643
        %vm646 = vcmp.eq.f32.partialorder %v347, %v364
        %vm647 = vcmp.eq.f32.partialorder %v348, %v371
        %vm648 = vcmp.eq.f32.partialorder %v349, %v364
        %vm649 = vcmp.eq.f32.partialorder %v350, %v371
        %vm650 = vcmp.eq.f32.partialorder %v351, %v364
        %vm651 = vcmp.eq.f32.partialorder %v352, %v371
        %vm652 = vcmp.eq.f32.partialorder %v353, %v364
        %vm653 = vcmp.eq.f32.partialorder %v354, %v371
        %v654 = vsel %vm646, 0, 4
        %v655 = vsel %vm647, 0, 4
        %v656 = vsel %vm648, 1, 4
        %v657 = vsel %vm649, 1, 4
        %v658 = vsel %vm650, 2, 4
        %v659 = vsel %vm651, 2, 4
        %v660 = vsel %vm652, 3, 4
        %v661 = vsel %vm653, 3, 4
        %v662 = vsel %vm357, %v654, 2147483647
        %v663 = vsel %vm357, %v656, 2147483647
        %v664 = vsel %vm357, %v658, 2147483647
        %vm665 = vcmp.lt.s32.totalorder %v662, %v664
        %v666 = vsel %vm665, %v662, %v664
        %v667 = vsel %vm357, %v660, 2147483647
        %vm668 = vcmp.lt.s32.totalorder %v663, %v667
        %v669 = vsel %vm668, %v663, %v667
        %vm670 = vcmp.lt.s32.totalorder %v666, %v669
        %v671 = vsel %vm670, %v666, %v669
        %v672 = vsel %vm357, %v655, 2147483647
        %v673 = vsel %vm357, %v657, 2147483647
        %v674 = vsel %vm357, %v659, 2147483647
        %vm675 = vcmp.lt.s32.totalorder %v672, %v674
        %v676 = vsel %vm675, %v672, %v674
        %v677 = vsel %vm357, %v661, 2147483647
        %vm678 = vcmp.lt.s32.totalorder %v673, %v677
        %v679 = vsel %vm678, %v673, %v677
        %vm680 = vcmp.lt.s32.totalorder %v676, %v679
        %v681 = vsel %vm680, %v676, %v679
        %v682 = vcvt.s32.f32 %v671
        %v683 = vcvt.s32.f32 %v681
        %v684 = vpack.c.bf16 %v683, %v682
        %v686 = vunpack.c.l.b16 %v684
        %v687 = vunpack.c.h.b16 %v684
        %v688 = vpack.c.b16 %v686, %v686
        %v689 = vpack.c.b16 %v687, %v687
        %692 = vst.msk [vmem:[%s345] sm:$0xf] %vm628, %v688
        %693 = vst.msk [vmem:[%s345 + $0x4] sm:$0xf] %vm628, %v689
        %p694 = scmp.lt.s32.totalorder %s27, 1
        %s695 = scalar_select %p694, %s27, 1
        %s696 = smul.addr %s695, 4
        %s697 = scalar_lea.vmem %s2, %s696
        %p698 = scmp.lt.s32.totalorder %s27, 1
        %s699 = scalar_select %p698, %s27, 1
        %s700 = smul.addr %s699, 4
        %s701 = scalar_lea.vmem %s3, %s700
        %p702 = scmp.lt.s32.totalorder %s27, 1
        %s703 = scalar_select %p702, %s27, 1
        %s704 = scalar_lea.vmem %s4, %s703
        %s705 = smul.u32 2, %s28
        %p706 = scmp.lt.s32.totalorder %s27, 1
        %s707 = scalar_select %p706, %s27, 1
        %p708 = scmp.lt.s32.totalorder %s705, 1
        %s709 = scalar_select %p708, %s705, 1
        %s710 = smul.addr %s707, 2
        %s711 = sadd.s32 %s709, %s710
        %s712 = smul.addr %s711, 4
        %s713 = scalar_lea.vmem %s5, %s712
        // Predicated region
        $region41: #{oh_my_loss.2} parent=27 // pred_check
          %p714 = pneg %p109
        $region42: #{oh_my_loss.2} parent=27 // pred_check_branch
          %716 = sbr.rel (%p714) target = $region44
        $region43: #{oh_my_loss.2} parent=27 // pred_region
          _
        $region44: #{oh_my_loss.2} parent=27 // pred_fallthru
          _
        // Predicated region
        $region45: #{oh_my_loss.2} parent=27 // pred_check
          %p717 = pneg %p135
        $region46: #{oh_my_loss.2} parent=27 // pred_check_branch
          %719 = sbr.rel (%p717) target = $region48
        $region47: #{oh_my_loss.2} parent=27 // pred_region
          _
        $region48: #{oh_my_loss.2} parent=27 // pred_fallthru
          _
        // Predicated region
        $region49: #{oh_my_loss.2} parent=27 // pred_check
          %p720 = pneg %p161
        $region50: #{oh_my_loss.2} parent=27 // pred_check_branch
          %722 = sbr.rel (%p720) target = $region52
        $region51: #{oh_my_loss.2} parent=27 // pred_region
          _
        $region52: #{oh_my_loss.2} parent=27 // pred_fallthru
          _
        // Predicated region
        $region53: #{oh_my_loss.2} parent=27 // pred_check
          %p723 = pneg %p189
        $region54: #{oh_my_loss.2} parent=27 // pred_check_branch
          %725 = sbr.rel (%p723) target = $region56
        $region55: #{oh_my_loss.2} parent=27 // pred_region
          %s726 = smul.u32 2, %s28
        $region56: #{oh_my_loss.2} parent=27 // pred_fallthru
          _
      $region28: #{oh_my_loss.2} parent=5 // pred_fallthru
        _
      %p727 = scmp.le.s32.totalorder 2, %s18
      // Predicated region
      $region57: #{oh_my_loss.2} parent=5 // pred_check
        %p728 = pneg %p727
      $region58: #{oh_my_loss.2} parent=5 // pred_check_branch
        %730 = sbr.rel (%p728) target = $region60
      $region59: #{oh_my_loss.2} parent=5 // pred_region
        %s731 = ssub.s32 %s18, 2
        // Predicated region
        $region61: #{oh_my_loss.2} parent=59 // pred_check
          %p732 = pneg %p115
        $region62: #{oh_my_loss.2} parent=59 // pred_check_branch
          %734 = sbr.rel (%p732) target = $region64
        $region63: #{oh_my_loss.2} parent=59 // pred_region
          %p735 = scmp.lt.s32.totalorder %s29, 1
          %s736 = scalar_select %p735, %s29, 1
          %s737 = smul.addr %s736, 4
          %s738 = scalar_lea.vmem %s2, %s737
        $region64: #{oh_my_loss.2} parent=59 // pred_fallthru
          _
        // Predicated region
        $region65: #{oh_my_loss.2} parent=59 // pred_check
          %p739 = pneg %p141
        $region66: #{oh_my_loss.2} parent=59 // pred_check_branch
          %741 = sbr.rel (%p739) target = $region68
        $region67: #{oh_my_loss.2} parent=59 // pred_region
          %p742 = scmp.lt.s32.totalorder %s29, 1
          %s743 = scalar_select %p742, %s29, 1
          %s744 = smul.addr %s743, 4
          %s745 = scalar_lea.vmem %s3, %s744
        $region68: #{oh_my_loss.2} parent=59 // pred_fallthru
          _
        // Predicated region
        $region69: #{oh_my_loss.2} parent=59 // pred_check
          %p746 = pneg %p167
        $region70: #{oh_my_loss.2} parent=59 // pred_check_branch
          %748 = sbr.rel (%p746) target = $region72
        $region71: #{oh_my_loss.2} parent=59 // pred_region
          %p749 = scmp.lt.s32.totalorder %s29, 1
          %s750 = scalar_select %p749, %s29, 1
          %s751 = scalar_lea.vmem %s4, %s750
        $region72: #{oh_my_loss.2} parent=59 // pred_fallthru
          _
        // Predicated region
        $region73: #{oh_my_loss.2} parent=59 // pred_check
          %p752 = pneg %p195
        $region74: #{oh_my_loss.2} parent=59 // pred_check_branch
          %754 = sbr.rel (%p752) target = $region76
        $region75: #{oh_my_loss.2} parent=59 // pred_region
          %s755 = smul.u32 2, %s30
          %p756 = scmp.lt.s32.totalorder %s29, 1
          %s757 = scalar_select %p756, %s29, 1
          %p758 = scmp.lt.s32.totalorder %s755, 1
          %s759 = scalar_select %p758, %s755, 1
          %s760 = smul.addr %s757, 2
          %s761 = sadd.s32 %s759, %s760
          %s762 = smul.addr %s761, 4
          %s763 = scalar_lea.vmem %s5, %s762
        $region76: #{oh_my_loss.2} parent=59 // pred_fallthru
          _
      $region60: #{oh_my_loss.2} parent=5 // pred_fallthru
        _
    $region6: #{oh_my_loss.2} parent=1 // loop_footer
      %s22 = sadd.s32 1, %s18
    $region7: #{oh_my_loss.2} parent=1 // loop_footer_branch
      %17 = sbr.rel target = $region3
    $region8: #{oh_my_loss.2} parent=1 // loop_exit
      _
    %764 = vsyncpa [#allocation3], 1
    %s765 = scalar_lea.sflag [#allocation3], 1
    %766 = vsyncpa %s765, 1
    %767 = vsyncpa [#allocation5], 1
    %s768 = scalar_lea.sflag [#allocation5], 1
    %769 = vsyncpa %s768, 1

// kernel: oh_my_loss.3
$region0: #{oh_my_loss.3}
  #allocation0 [shape = 'u32[]', space=smem, size = 0x4, offset = 0x4, fixed_abs, tag = 'smem constant byte address 0x4 - core index']
  #allocation1 [shape = 'u32[144,128]{1,0:T(1,128)}', space=vmem, size = 0x12000, scoped, tag = 'internal scratch']
  %s0 = inlined_call_operand.vmem [shape: bf16[2,16,16], index: 0, kind: input, shape index: {}]
  %s1 = inlined_call_operand.vmem [shape: s32[2,16,16], index: 1, kind: input, shape index: {}]
  %s2 = inlined_call_operand.vmem [shape: bf16[16,16], index: 2, kind: input, shape index: {}, may-alias: {2,3}]
  %s3 = inlined_call_operand.vmem [shape: bf16[16,16], index: 3, kind: input, shape index: {}, may-alias: {2,3}]
  %s4 = inlined_call_operand.hbm [shape: f32[1,1,1], index: 4, kind: output, shape index: {}]
  %s5 = sld [smem:[#allocation0]]
  $region26: #{oh_my_loss.3} parent=0
    _
  %s7 = ssub.s32 1, %s5
  %s8 = scalar_select 0, %s7, %s5
  $region1: #{oh_my_loss.3} parent=0
    #allocation2 [shape = 'u8[512]{0}', space=vmem, size = 0x400, scoped, tag = 'output window, operand 0, single buffered']
    #allocation3 [shape = 's32[1]{0}', space=sflag, size = 0x4, scoped, tag = 'scoped memory for oh_my_loss.3']
    %9 = vsyncpa [#allocation3], 0
    // Predicated region
    $region2: #{oh_my_loss.3} parent=1 // pred_check
      _
    $region3: #{oh_my_loss.3} parent=1 // pred_check_branch
      %11 = sbr.rel (0) target = $region5
    $region4: #{oh_my_loss.3} parent=1 // pred_region
      _
    $region5: #{oh_my_loss.3} parent=1 // pred_fallthru
      _
    // Predicated region
    $region6: #{oh_my_loss.3} parent=1 // pred_check
      _
    $region7: #{oh_my_loss.3} parent=1 // pred_check_branch
      %13 = sbr.rel (0) target = $region9
    $region8: #{oh_my_loss.3} parent=1 // pred_region
      _
    $region9: #{oh_my_loss.3} parent=1 // pred_fallthru
      _
    // Predicated region
    $region10: #{oh_my_loss.3} parent=1 // pred_check
      _
    $region11: #{oh_my_loss.3} parent=1 // pred_check_branch
      %15 = sbr.rel (0) target = $region13
    $region12: #{oh_my_loss.3} parent=1 // pred_region
      _
    $region13: #{oh_my_loss.3} parent=1 // pred_fallthru
      _
    // Predicated region
    $region14: #{oh_my_loss.3} parent=1 // pred_check
      _
    $region15: #{oh_my_loss.3} parent=1 // pred_check_branch
      %17 = sbr.rel (0) target = $region17
    $region16: #{oh_my_loss.3} parent=1 // pred_region
      _
    $region17: #{oh_my_loss.3} parent=1 // pred_fallthru
      _
    %v19 = vld [vmem:[%s0] sm:$0xf]
    %v20 = vld [vmem:[%s0 + $0x4] sm:$0xf]
    %v21 = vld [vmem:[%s0 + $0x8] sm:$0xf]
    %v22 = vld [vmem:[%s0 + $0xc] sm:$0xf]
    %v23 = vld [vmem:[%s1] sm:$0xff]
    %v24 = vld [vmem:[%s1 + $0x8] sm:$0xff]
    %v25 = vld [vmem:[%s1 + $0x10] sm:$0xff]
    %v26 = vld [vmem:[%s1 + $0x18] sm:$0xff]
    %v27 = vcvt.s32.f32 %v23
    %v28 = vcvt.s32.f32 %v24
    %v29 = vcvt.s32.f32 %v25
    %v30 = vcvt.s32.f32 %v26
    %v31 = vpack.c.bf16 %v28, %v27
    %v32 = vpack.c.bf16 %v30, %v29
    %v33 = vld [vmem:[%s2] sm:$0xf]
    %v34 = vld [vmem:[%s2 + $0x4] sm:$0xf]
    %v35 = vld [vmem:[%s3] sm:$0xf]
    %v36 = vld [vmem:[%s3 + $0x4] sm:$0xf]
    %v37 = vmul.bf16 %v19, %v19
    %v38 = vmul.bf16 %v20, %v20
    %v39 = vmul.bf16 %v21, %v21
    %v40 = vmul.bf16 %v22, %v22
    %v41 = vmul.bf16 %v31, %v31
    %v42 = vmul.bf16 %v32, %v32
    %v45 = vunpack.c.l.b16 %v31
    %v46 = vunpack.c.h.b16 %v31
    %v47 = vunpack.c.l.b16 %v32
    %v48 = vunpack.c.h.b16 %v32
    %v49 = vpack.c.b16 %v45, %v45
    %v50 = vpack.c.b16 %v46, %v46
    %v51 = vpack.c.b16 %v47, %v47
    %v52 = vpack.c.b16 %v48, %v48
    %v57 = vmul.bf16 %v19, %v49
    %v58 = vmul.bf16 %v20, %v50
    %v59 = vmul.bf16 %v21, %v51
    %v60 = vmul.bf16 %v22, %v52
    %v63 = vunpack.c.l.b16 %v33
    %v64 = vunpack.c.l.b16 %v34
    %v65 = vpack.c.b16 %v64, %v63
    %v68 = vunpack.c.l.b16 %v19
    %v69 = vunpack.c.l.b16 %v20
    %v70 = vpack.c.b16 %v69, %v68
    %vm72 = vcmask 130048
    %v74 = vsel %vm72, %v65, 0
    %76 = vmatprep.subr.bf16.mxu0 0
    %77 = vmatpush1.bf16.msra.mxu0 0
    %78 = vmatprep.subr.bf16.mxu0 0
    %79 = vmatpush1.bf16.msra.mxu0 0
    %80 = vmatprep.subr.bf16.mxu0 0
    %81 = vmatpush1.bf16.msra.mxu0 0
    %82 = vmatprep.subr.bf16.mxu0 0
    %83 = vmatpush1.bf16.msra.mxu0 0
    %84 = vmatprep.subr.bf16.mxu0 0
    %85 = vmatpush1.bf16.msra.mxu0 0
    %86 = vmatprep.subr.bf16.mxu0 0
    %87 = vmatpush1.bf16.msra.mxu0 0
    %88 = vmatprep.subr.bf16.mxu0 0
    %89 = vmatpush1.bf16.msra.mxu0 0
    %90 = vmatprep.subr.bf16.mxu0 0
    %91 = vmatpush1.bf16.msra.mxu0 %v70
    %92 = vmatprep.subr.bf16.mxu0 0
    %93 = vmatpush2.bf16.msra.mxu0 0
    %94 = vmatprep.subr.bf16.mxu0 0
    %95 = vmatpush2.bf16.msra.mxu0 0
    %96 = vmatprep.subr.bf16.mxu0 0
    %97 = vmatpush2.bf16.msra.mxu0 0
    %98 = vmatprep.subr.bf16.mxu0 0
    %99 = vmatpush2.bf16.msra.mxu0 0
    %100 = vmatprep.subr.bf16.mxu0 0
    %101 = vmatpush2.bf16.msra.mxu0 0
    %102 = vmatprep.subr.bf16.mxu0 0
    %103 = vmatpush2.bf16.msra.mxu0 0
    %104 = vmatprep.subr.bf16.mxu0 0
    %105 = vmatpush2.bf16.msra.mxu0 0
    %106 = vmatprep.subr.bf16.mxu0 0
    %107 = vmatpush2.bf16.msra.mxu0 0
    %108 = vmatprep.mubr.bf16.mxu0 0
    %109 = vmatmul.mubr.bf16.gmra.mxu0 %v74
    %v110 = vpop.f32.mrf.mxu0
    %v111 = vadd.f32 0.0, %v110
    %v112 = vpop.f32.mrf.mxu0
    %v113 = vpop.f32.mrf.mxu0
    %v114 = vadd.f32 0.0, %v113
    %v115 = vpop.f32.mrf.mxu0
    %116 = vdwg.mxu0
    %v117 = vpack.c.bf16 %v114, %v111
    %v120 = vunpack.c.l.b16 %v21
    %v121 = vunpack.c.l.b16 %v22
    %v122 = vpack.c.b16 %v121, %v120
    %124 = vmatprep.subr.bf16.mxu0 0
    %125 = vmatpush1.bf16.msra.mxu0 0
    %126 = vmatprep.subr.bf16.mxu0 0
    %127 = vmatpush1.bf16.msra.mxu0 0
    %128 = vmatprep.subr.bf16.mxu0 0
    %129 = vmatpush1.bf16.msra.mxu0 0
    %130 = vmatprep.subr.bf16.mxu0 0
    %131 = vmatpush1.bf16.msra.mxu0 0
    %132 = vmatprep.subr.bf16.mxu0 0
    %133 = vmatpush1.bf16.msra.mxu0 0
    %134 = vmatprep.subr.bf16.mxu0 0
    %135 = vmatpush1.bf16.msra.mxu0 0
    %136 = vmatprep.subr.bf16.mxu0 0
    %137 = vmatpush1.bf16.msra.mxu0 0
    %138 = vmatprep.subr.bf16.mxu0 0
    %139 = vmatpush1.bf16.msra.mxu0 %v122
    %140 = vmatprep.subr.bf16.mxu0 0
    %141 = vmatpush2.bf16.msra.mxu0 0
    %142 = vmatprep.subr.bf16.mxu0 0
    %143 = vmatpush2.bf16.msra.mxu0 0
    %144 = vmatprep.subr.bf16.mxu0 0
    %145 = vmatpush2.bf16.msra.mxu0 0
    %146 = vmatprep.subr.bf16.mxu0 0
    %147 = vmatpush2.bf16.msra.mxu0 0
    %148 = vmatprep.subr.bf16.mxu0 0
    %149 = vmatpush2.bf16.msra.mxu0 0
    %150 = vmatprep.subr.bf16.mxu0 0
    %151 = vmatpush2.bf16.msra.mxu0 0
    %152 = vmatprep.subr.bf16.mxu0 0
    %153 = vmatpush2.bf16.msra.mxu0 0
    %154 = vmatprep.subr.bf16.mxu0 0
    %155 = vmatpush2.bf16.msra.mxu0 0
    %156 = vmatprep.mubr.bf16.mxu0 0
    %157 = vmatmul.mubr.bf16.gmra.mxu0 %v74
    %v158 = vpop.f32.mrf.mxu0
    %v159 = vadd.f32 0.0, %v158
    %v160 = vpop.f32.mrf.mxu0
    %v161 = vpop.f32.mrf.mxu0
    %v162 = vadd.f32 0.0, %v161
    %v163 = vpop.f32.mrf.mxu0
    %164 = vdwg.mxu0
    %v165 = vpack.c.bf16 %v162, %v159
    %166 = vmatprep.subr.bf16.mxu0 0
    %167 = vmatpush1.bf16.msra.mxu0 0
    %168 = vmatprep.subr.bf16.mxu0 0
    %169 = vmatpush1.bf16.msra.mxu0 0
    %170 = vmatprep.subr.bf16.mxu0 0
    %171 = vmatpush1.bf16.msra.mxu0 0
    %172 = vmatprep.subr.bf16.mxu0 0
    %173 = vmatpush1.bf16.msra.mxu0 0
    %174 = vmatprep.subr.bf16.mxu0 0
    %175 = vmatpush1.bf16.msra.mxu0 0
    %176 = vmatprep.subr.bf16.mxu0 0
    %177 = vmatpush1.bf16.msra.mxu0 0
    %178 = vmatprep.subr.bf16.mxu0 0
    %179 = vmatpush1.bf16.msra.mxu0 0
    %180 = vmatprep.subr.bf16.mxu0 0
    %181 = vmatpush1.bf16.msra.mxu0 %v31
    %182 = vmatprep.subr.bf16.mxu0 0
    %183 = vmatpush2.bf16.msra.mxu0 0
    %184 = vmatprep.subr.bf16.mxu0 0
    %185 = vmatpush2.bf16.msra.mxu0 0
    %186 = vmatprep.subr.bf16.mxu0 0
    %187 = vmatpush2.bf16.msra.mxu0 0
    %188 = vmatprep.subr.bf16.mxu0 0
    %189 = vmatpush2.bf16.msra.mxu0 0
    %190 = vmatprep.subr.bf16.mxu0 0
    %191 = vmatpush2.bf16.msra.mxu0 0
    %192 = vmatprep.subr.bf16.mxu0 0
    %193 = vmatpush2.bf16.msra.mxu0 0
    %194 = vmatprep.subr.bf16.mxu0 0
    %195 = vmatpush2.bf16.msra.mxu0 0
    %196 = vmatprep.subr.bf16.mxu0 0
    %197 = vmatpush2.bf16.msra.mxu0 0
    %198 = vmatprep.mubr.bf16.mxu0 0
    %199 = vmatmul.mubr.bf16.gmra.mxu0 %v74
    %v200 = vpop.f32.mrf.mxu0
    %v201 = vadd.f32 0.0, %v200
    %v202 = vpop.f32.mrf.mxu0
    %v203 = vpop.f32.mrf.mxu0
    %v204 = vadd.f32 0.0, %v203
    %v205 = vpop.f32.mrf.mxu0
    %206 = vdwg.mxu0
    %v207 = vpack.c.bf16 %v204, %v201
    %208 = vmatprep.subr.bf16.mxu0 0
    %209 = vmatpush1.bf16.msra.mxu0 0
    %210 = vmatprep.subr.bf16.mxu0 0
    %211 = vmatpush1.bf16.msra.mxu0 0
    %212 = vmatprep.subr.bf16.mxu0 0
    %213 = vmatpush1.bf16.msra.mxu0 0
    %214 = vmatprep.subr.bf16.mxu0 0
    %215 = vmatpush1.bf16.msra.mxu0 0
    %216 = vmatprep.subr.bf16.mxu0 0
    %217 = vmatpush1.bf16.msra.mxu0 0
    %218 = vmatprep.subr.bf16.mxu0 0
    %219 = vmatpush1.bf16.msra.mxu0 0
    %220 = vmatprep.subr.bf16.mxu0 0
    %221 = vmatpush1.bf16.msra.mxu0 0
    %222 = vmatprep.subr.bf16.mxu0 0
    %223 = vmatpush1.bf16.msra.mxu0 %v32
    %224 = vmatprep.subr.bf16.mxu0 0
    %225 = vmatpush2.bf16.msra.mxu0 0
    %226 = vmatprep.subr.bf16.mxu0 0
    %227 = vmatpush2.bf16.msra.mxu0 0
    %228 = vmatprep.subr.bf16.mxu0 0
    %229 = vmatpush2.bf16.msra.mxu0 0
    %230 = vmatprep.subr.bf16.mxu0 0
    %231 = vmatpush2.bf16.msra.mxu0 0
    %232 = vmatprep.subr.bf16.mxu0 0
    %233 = vmatpush2.bf16.msra.mxu0 0
    %234 = vmatprep.subr.bf16.mxu0 0
    %235 = vmatpush2.bf16.msra.mxu0 0
    %236 = vmatprep.subr.bf16.mxu0 0
    %237 = vmatpush2.bf16.msra.mxu0 0
    %238 = vmatprep.subr.bf16.mxu0 0
    %239 = vmatpush2.bf16.msra.mxu0 0
    %240 = vmatprep.mubr.bf16.mxu0 0
    %241 = vmatmul.mubr.bf16.gmra.mxu0 %v74
    %v242 = vpop.f32.mrf.mxu0
    %v243 = vadd.f32 0.0, %v242
    %v244 = vpop.f32.mrf.mxu0
    %v245 = vpop.f32.mrf.mxu0
    %v246 = vadd.f32 0.0, %v245
    %v247 = vpop.f32.mrf.mxu0
    %248 = vdwg.mxu0
    %v249 = vpack.c.bf16 %v246, %v243
    %v252 = vunpack.c.l.b16 %v37
    %v253 = vunpack.c.l.b16 %v38
    %v254 = vpack.c.b16 %v253, %v252
    %256 = vmatprep.subr.bf16.mxu0 0
    %257 = vmatpush1.bf16.msra.mxu0 0
    %258 = vmatprep.subr.bf16.mxu0 0
    %259 = vmatpush1.bf16.msra.mxu0 0
    %260 = vmatprep.subr.bf16.mxu0 0
    %261 = vmatpush1.bf16.msra.mxu0 0
    %262 = vmatprep.subr.bf16.mxu0 0
    %263 = vmatpush1.bf16.msra.mxu0 0
    %264 = vmatprep.subr.bf16.mxu0 0
    %265 = vmatpush1.bf16.msra.mxu0 0
    %266 = vmatprep.subr.bf16.mxu0 0
    %267 = vmatpush1.bf16.msra.mxu0 0
    %268 = vmatprep.subr.bf16.mxu0 0
    %269 = vmatpush1.bf16.msra.mxu0 0
    %270 = vmatprep.subr.bf16.mxu0 0
    %271 = vmatpush1.bf16.msra.mxu0 %v254
    %272 = vmatprep.subr.bf16.mxu0 0
    %273 = vmatpush2.bf16.msra.mxu0 0
    %274 = vmatprep.subr.bf16.mxu0 0
    %275 = vmatpush2.bf16.msra.mxu0 0
    %276 = vmatprep.subr.bf16.mxu0 0
    %277 = vmatpush2.bf16.msra.mxu0 0
    %278 = vmatprep.subr.bf16.mxu0 0
    %279 = vmatpush2.bf16.msra.mxu0 0
    %280 = vmatprep.subr.bf16.mxu0 0
    %281 = vmatpush2.bf16.msra.mxu0 0
    %282 = vmatprep.subr.bf16.mxu0 0
    %283 = vmatpush2.bf16.msra.mxu0 0
    %284 = vmatprep.subr.bf16.mxu0 0
    %285 = vmatpush2.bf16.msra.mxu0 0
    %286 = vmatprep.subr.bf16.mxu0 0
    %287 = vmatpush2.bf16.msra.mxu0 0
    %288 = vmatprep.mubr.bf16.mxu0 0
    %289 = vmatmul.mubr.bf16.gmra.mxu0 %v74
    %v290 = vpop.f32.mrf.mxu0
    %v291 = vadd.f32 0.0, %v290
    %v292 = vpop.f32.mrf.mxu0
    %v293 = vpop.f32.mrf.mxu0
    %v294 = vadd.f32 0.0, %v293
    %v295 = vpop.f32.mrf.mxu0
    %296 = vdwg.mxu0
    %v297 = vpack.c.bf16 %v294, %v291
    %v300 = vunpack.c.l.b16 %v39
    %v301 = vunpack.c.l.b16 %v40
    %v302 = vpack.c.b16 %v301, %v300
    %304 = vmatprep.subr.bf16.mxu0 0
    %305 = vmatpush1.bf16.msra.mxu0 0
    %306 = vmatprep.subr.bf16.mxu0 0
    %307 = vmatpush1.bf16.msra.mxu0 0
    %308 = vmatprep.subr.bf16.mxu0 0
    %309 = vmatpush1.bf16.msra.mxu0 0
    %310 = vmatprep.subr.bf16.mxu0 0
    %311 = vmatpush1.bf16.msra.mxu0 0
    %312 = vmatprep.subr.bf16.mxu0 0
    %313 = vmatpush1.bf16.msra.mxu0 0
    %314 = vmatprep.subr.bf16.mxu0 0
    %315 = vmatpush1.bf16.msra.mxu0 0
    %316 = vmatprep.subr.bf16.mxu0 0
    %317 = vmatpush1.bf16.msra.mxu0 0
    %318 = vmatprep.subr.bf16.mxu0 0
    %319 = vmatpush1.bf16.msra.mxu0 %v302
    %320 = vmatprep.subr.bf16.mxu0 0
    %321 = vmatpush2.bf16.msra.mxu0 0
    %322 = vmatprep.subr.bf16.mxu0 0
    %323 = vmatpush2.bf16.msra.mxu0 0
    %324 = vmatprep.subr.bf16.mxu0 0
    %325 = vmatpush2.bf16.msra.mxu0 0
    %326 = vmatprep.subr.bf16.mxu0 0
    %327 = vmatpush2.bf16.msra.mxu0 0
    %328 = vmatprep.subr.bf16.mxu0 0
    %329 = vmatpush2.bf16.msra.mxu0 0
    %330 = vmatprep.subr.bf16.mxu0 0
    %331 = vmatpush2.bf16.msra.mxu0 0
    %332 = vmatprep.subr.bf16.mxu0 0
    %333 = vmatpush2.bf16.msra.mxu0 0
    %334 = vmatprep.subr.bf16.mxu0 0
    %335 = vmatpush2.bf16.msra.mxu0 0
    %336 = vmatprep.mubr.bf16.mxu0 0
    %337 = vmatmul.mubr.bf16.gmra.mxu0 %v74
    %v338 = vpop.f32.mrf.mxu0
    %v339 = vadd.f32 0.0, %v338
    %v340 = vpop.f32.mrf.mxu0
    %v341 = vpop.f32.mrf.mxu0
    %v342 = vadd.f32 0.0, %v341
    %v343 = vpop.f32.mrf.mxu0
    %344 = vdwg.mxu0
    %v345 = vpack.c.bf16 %v342, %v339
    %346 = vmatprep.subr.bf16.mxu0 0
    %347 = vmatpush1.bf16.msra.mxu0 0
    %348 = vmatprep.subr.bf16.mxu0 0
    %349 = vmatpush1.bf16.msra.mxu0 0
    %350 = vmatprep.subr.bf16.mxu0 0
    %351 = vmatpush1.bf16.msra.mxu0 0
    %352 = vmatprep.subr.bf16.mxu0 0
    %353 = vmatpush1.bf16.msra.mxu0 0
    %354 = vmatprep.subr.bf16.mxu0 0
    %355 = vmatpush1.bf16.msra.mxu0 0
    %356 = vmatprep.subr.bf16.mxu0 0
    %357 = vmatpush1.bf16.msra.mxu0 0
    %358 = vmatprep.subr.bf16.mxu0 0
    %359 = vmatpush1.bf16.msra.mxu0 0
    %360 = vmatprep.subr.bf16.mxu0 0
    %361 = vmatpush1.bf16.msra.mxu0 %v41
    %362 = vmatprep.subr.bf16.mxu0 0
    %363 = vmatpush2.bf16.msra.mxu0 0
    %364 = vmatprep.subr.bf16.mxu0 0
    %365 = vmatpush2.bf16.msra.mxu0 0
    %366 = vmatprep.subr.bf16.mxu0 0
    %367 = vmatpush2.bf16.msra.mxu0 0
    %368 = vmatprep.subr.bf16.mxu0 0
    %369 = vmatpush2.bf16.msra.mxu0 0
    %370 = vmatprep.subr.bf16.mxu0 0
    %371 = vmatpush2.bf16.msra.mxu0 0
    %372 = vmatprep.subr.bf16.mxu0 0
    %373 = vmatpush2.bf16.msra.mxu0 0
    %374 = vmatprep.subr.bf16.mxu0 0
    %375 = vmatpush2.bf16.msra.mxu0 0
    %376 = vmatprep.subr.bf16.mxu0 0
    %377 = vmatpush2.bf16.msra.mxu0 0
    %378 = vmatprep.mubr.bf16.mxu0 0
    %379 = vmatmul.mubr.bf16.gmra.mxu0 %v74
    %v380 = vpop.f32.mrf.mxu0
    %v381 = vadd.f32 0.0, %v380
    %v382 = vpop.f32.mrf.mxu0
    %v383 = vpop.f32.mrf.mxu0
    %v384 = vadd.f32 0.0, %v383
    %v385 = vpop.f32.mrf.mxu0
    %386 = vdwg.mxu0
    %v387 = vpack.c.bf16 %v384, %v381
    %388 = vmatprep.subr.bf16.mxu0 0
    %389 = vmatpush1.bf16.msra.mxu0 0
    %390 = vmatprep.subr.bf16.mxu0 0
    %391 = vmatpush1.bf16.msra.mxu0 0
    %392 = vmatprep.subr.bf16.mxu0 0
    %393 = vmatpush1.bf16.msra.mxu0 0
    %394 = vmatprep.subr.bf16.mxu0 0
    %395 = vmatpush1.bf16.msra.mxu0 0
    %396 = vmatprep.subr.bf16.mxu0 0
    %397 = vmatpush1.bf16.msra.mxu0 0
    %398 = vmatprep.subr.bf16.mxu0 0
    %399 = vmatpush1.bf16.msra.mxu0 0
    %400 = vmatprep.subr.bf16.mxu0 0
    %401 = vmatpush1.bf16.msra.mxu0 0
    %402 = vmatprep.subr.bf16.mxu0 0
    %403 = vmatpush1.bf16.msra.mxu0 %v42
    %404 = vmatprep.subr.bf16.mxu0 0
    %405 = vmatpush2.bf16.msra.mxu0 0
    %406 = vmatprep.subr.bf16.mxu0 0
    %407 = vmatpush2.bf16.msra.mxu0 0
    %408 = vmatprep.subr.bf16.mxu0 0
    %409 = vmatpush2.bf16.msra.mxu0 0
    %410 = vmatprep.subr.bf16.mxu0 0
    %411 = vmatpush2.bf16.msra.mxu0 0
    %412 = vmatprep.subr.bf16.mxu0 0
    %413 = vmatpush2.bf16.msra.mxu0 0
    %414 = vmatprep.subr.bf16.mxu0 0
    %415 = vmatpush2.bf16.msra.mxu0 0
    %416 = vmatprep.subr.bf16.mxu0 0
    %417 = vmatpush2.bf16.msra.mxu0 0
    %418 = vmatprep.subr.bf16.mxu0 0
    %419 = vmatpush2.bf16.msra.mxu0 0
    %420 = vmatprep.mubr.bf16.mxu0 0
    %421 = vmatmul.mubr.bf16.gmra.mxu0 %v74
    %v422 = vpop.f32.mrf.mxu0
    %v423 = vadd.f32 0.0, %v422
    %v424 = vpop.f32.mrf.mxu0
    %v425 = vpop.f32.mrf.mxu0
    %v426 = vadd.f32 0.0, %v425
    %v427 = vpop.f32.mrf.mxu0
    %428 = vdwg.mxu0
    %v429 = vpack.c.bf16 %v426, %v423
    %v432 = vunpack.c.l.b16 %v57
    %v433 = vunpack.c.l.b16 %v58
    %v434 = vpack.c.b16 %v433, %v432
    %436 = vmatprep.subr.bf16.mxu0 0
    %437 = vmatpush1.bf16.msra.mxu0 0
    %438 = vmatprep.subr.bf16.mxu0 0
    %439 = vmatpush1.bf16.msra.mxu0 0
    %440 = vmatprep.subr.bf16.mxu0 0
    %441 = vmatpush1.bf16.msra.mxu0 0
    %442 = vmatprep.subr.bf16.mxu0 0
    %443 = vmatpush1.bf16.msra.mxu0 0
    %444 = vmatprep.subr.bf16.mxu0 0
    %445 = vmatpush1.bf16.msra.mxu0 0
    %446 = vmatprep.subr.bf16.mxu0 0
    %447 = vmatpush1.bf16.msra.mxu0 0
    %448 = vmatprep.subr.bf16.mxu0 0
    %449 = vmatpush1.bf16.msra.mxu0 0
    %450 = vmatprep.subr.bf16.mxu0 0
    %451 = vmatpush1.bf16.msra.mxu0 %v434
    %452 = vmatprep.subr.bf16.mxu0 0
    %453 = vmatpush2.bf16.msra.mxu0 0
    %454 = vmatprep.subr.bf16.mxu0 0
    %455 = vmatpush2.bf16.msra.mxu0 0
    %456 = vmatprep.subr.bf16.mxu0 0
    %457 = vmatpush2.bf16.msra.mxu0 0
    %458 = vmatprep.subr.bf16.mxu0 0
    %459 = vmatpush2.bf16.msra.mxu0 0
    %460 = vmatprep.subr.bf16.mxu0 0
    %461 = vmatpush2.bf16.msra.mxu0 0
    %462 = vmatprep.subr.bf16.mxu0 0
    %463 = vmatpush2.bf16.msra.mxu0 0
    %464 = vmatprep.subr.bf16.mxu0 0
    %465 = vmatpush2.bf16.msra.mxu0 0
    %466 = vmatprep.subr.bf16.mxu0 0
    %467 = vmatpush2.bf16.msra.mxu0 0
    %468 = vmatprep.mubr.bf16.mxu0 0
    %469 = vmatmul.mubr.bf16.gmra.mxu0 %v74
    %v470 = vpop.f32.mrf.mxu0
    %v471 = vadd.f32 0.0, %v470
    %v472 = vpop.f32.mrf.mxu0
    %v473 = vpop.f32.mrf.mxu0
    %v474 = vadd.f32 0.0, %v473
    %v475 = vpop.f32.mrf.mxu0
    %476 = vdwg.mxu0
    %v477 = vpack.c.bf16 %v474, %v471
    %v480 = vunpack.c.l.b16 %v59
    %v481 = vunpack.c.l.b16 %v60
    %v482 = vpack.c.b16 %v481, %v480
    %484 = vmatprep.subr.bf16.mxu0 0
    %485 = vmatpush1.bf16.msra.mxu0 0
    %486 = vmatprep.subr.bf16.mxu0 0
    %487 = vmatpush1.bf16.msra.mxu0 0
    %488 = vmatprep.subr.bf16.mxu0 0
    %489 = vmatpush1.bf16.msra.mxu0 0
    %490 = vmatprep.subr.bf16.mxu0 0
    %491 = vmatpush1.bf16.msra.mxu0 0
    %492 = vmatprep.subr.bf16.mxu0 0
    %493 = vmatpush1.bf16.msra.mxu0 0
    %494 = vmatprep.subr.bf16.mxu0 0
    %495 = vmatpush1.bf16.msra.mxu0 0
    %496 = vmatprep.subr.bf16.mxu0 0
    %497 = vmatpush1.bf16.msra.mxu0 0
    %498 = vmatprep.subr.bf16.mxu0 0
    %499 = vmatpush1.bf16.msra.mxu0 %v482
    %500 = vmatprep.subr.bf16.mxu0 0
    %501 = vmatpush2.bf16.msra.mxu0 0
    %502 = vmatprep.subr.bf16.mxu0 0
    %503 = vmatpush2.bf16.msra.mxu0 0
    %504 = vmatprep.subr.bf16.mxu0 0
    %505 = vmatpush2.bf16.msra.mxu0 0
    %506 = vmatprep.subr.bf16.mxu0 0
    %507 = vmatpush2.bf16.msra.mxu0 0
    %508 = vmatprep.subr.bf16.mxu0 0
    %509 = vmatpush2.bf16.msra.mxu0 0
    %510 = vmatprep.subr.bf16.mxu0 0
    %511 = vmatpush2.bf16.msra.mxu0 0
    %512 = vmatprep.subr.bf16.mxu0 0
    %513 = vmatpush2.bf16.msra.mxu0 0
    %514 = vmatprep.subr.bf16.mxu0 0
    %515 = vmatpush2.bf16.msra.mxu0 0
    %516 = vmatprep.mubr.bf16.mxu0 0
    %517 = vmatmul.mubr.bf16.gmra.mxu0 %v74
    %v518 = vpop.f32.mrf.mxu0
    %v519 = vadd.f32 0.0, %v518
    %v520 = vpop.f32.mrf.mxu0
    %v521 = vpop.f32.mrf.mxu0
    %v522 = vadd.f32 0.0, %v521
    %v523 = vpop.f32.mrf.mxu0
    %524 = vdwg.mxu0
    %v525 = vpack.c.bf16 %v522, %v519
    %v528 = vunpack.c.l.b16 %v35
    %v529 = vunpack.c.l.b16 %v36
    %v530 = vpack.c.b16 %v529, %v528
    %v533 = vsel %vm72, %v117, 0
    %v536 = vsel %vm72, %v165, 0
    %v539 = vsel %vm72, %v207, 0
    %v542 = vsel %vm72, %v249, 0
    %v545 = vsel %vm72, %v297, 0
    %v548 = vsel %vm72, %v345, 0
    %v551 = vsel %vm72, %v387, 0
    %v554 = vsel %vm72, %v429, 0
    %v557 = vsel %vm72, %v477, 0
    %v560 = vsel %vm72, %v525, 0
    %562 = vmatprep.subr.bf16.mxu0 0
    %563 = vmatpush1.bf16.msra.mxu0 0
    %564 = vmatprep.subr.bf16.mxu0 0
    %565 = vmatpush1.bf16.msra.mxu0 0
    %566 = vmatprep.subr.bf16.mxu0 0
    %567 = vmatpush1.bf16.msra.mxu0 0
    %568 = vmatprep.subr.bf16.mxu0 0
    %569 = vmatpush1.bf16.msra.mxu0 0
    %570 = vmatprep.subr.bf16.mxu0 0
    %571 = vmatpush1.bf16.msra.mxu0 0
    %572 = vmatprep.subr.bf16.mxu0 0
    %573 = vmatpush1.bf16.msra.mxu0 0
    %574 = vmatprep.subr.bf16.mxu0 0
    %575 = vmatpush1.bf16.msra.mxu0 0
    %576 = vmatprep.subr.bf16.mxu0 0
    %577 = vmatpush1.bf16.msra.mxu0 %v530
    %578 = vmatprep.subr.bf16.mxu0 0
    %579 = vmatpush2.bf16.msra.mxu0 0
    %580 = vmatprep.subr.bf16.mxu0 0
    %581 = vmatpush2.bf16.msra.mxu0 0
    %582 = vmatprep.subr.bf16.mxu0 0
    %583 = vmatpush2.bf16.msra.mxu0 0
    %584 = vmatprep.subr.bf16.mxu0 0
    %585 = vmatpush2.bf16.msra.mxu0 0
    %586 = vmatprep.subr.bf16.mxu0 0
    %587 = vmatpush2.bf16.msra.mxu0 0
    %588 = vmatprep.subr.bf16.mxu0 0
    %589 = vmatpush2.bf16.msra.mxu0 0
    %590 = vmatprep.subr.bf16.mxu0 0
    %591 = vmatpush2.bf16.msra.mxu0 0
    %592 = vmatprep.subr.bf16.mxu0 0
    %593 = vmatpush2.bf16.msra.mxu0 0
    %594 = vmatprep.mubr.bf16.mxu0 0
    %595 = vmatmul.mubr.bf16.gmra.mxu0 %v533
    %v596 = vpop.f32.mrf.mxu0
    %v597 = vadd.f32 0.0, %v596
    %v598 = vpop.f32.mrf.mxu0
    %v599 = vpop.f32.mrf.mxu0
    %v600 = vadd.f32 0.0, %v599
    %v601 = vpop.f32.mrf.mxu0
    %602 = vmatprep.mubr.bf16.mxu0 0
    %603 = vmatmul.mubr.bf16.gmra.mxu0 %v536
    %v604 = vpop.f32.mrf.mxu0
    %v605 = vadd.f32 0.0, %v604
    %v606 = vpop.f32.mrf.mxu0
    %v607 = vpop.f32.mrf.mxu0
    %v608 = vadd.f32 0.0, %v607
    %v609 = vpop.f32.mrf.mxu0
    %610 = vmatprep.mubr.bf16.mxu0 0
    %611 = vmatmul.mubr.bf16.gmra.mxu0 %v539
    %v612 = vpop.f32.mrf.mxu0
    %v613 = vadd.f32 0.0, %v612
    %v614 = vpop.f32.mrf.mxu0
    %v615 = vpop.f32.mrf.mxu0
    %v616 = vadd.f32 0.0, %v615
    %v617 = vpop.f32.mrf.mxu0
    %618 = vmatprep.mubr.bf16.mxu0 0
    %619 = vmatmul.mubr.bf16.gmra.mxu0 %v542
    %v620 = vpop.f32.mrf.mxu0
    %v621 = vadd.f32 0.0, %v620
    %v622 = vpop.f32.mrf.mxu0
    %v623 = vpop.f32.mrf.mxu0
    %v624 = vadd.f32 0.0, %v623
    %v625 = vpop.f32.mrf.mxu0
    %626 = vmatprep.mubr.bf16.mxu0 0
    %627 = vmatmul.mubr.bf16.gmra.mxu0 %v545
    %v628 = vpop.f32.mrf.mxu0
    %v629 = vadd.f32 0.0, %v628
    %v630 = vpop.f32.mrf.mxu0
    %v631 = vpop.f32.mrf.mxu0
    %v632 = vadd.f32 0.0, %v631
    %v633 = vpop.f32.mrf.mxu0
    %634 = vmatprep.mubr.bf16.mxu0 0
    %635 = vmatmul.mubr.bf16.gmra.mxu0 %v548
    %v636 = vpop.f32.mrf.mxu0
    %v637 = vadd.f32 0.0, %v636
    %v638 = vpop.f32.mrf.mxu0
    %v639 = vpop.f32.mrf.mxu0
    %v640 = vadd.f32 0.0, %v639
    %v641 = vpop.f32.mrf.mxu0
    %642 = vmatprep.mubr.bf16.mxu0 0
    %643 = vmatmul.mubr.bf16.gmra.mxu0 %v551
    %v644 = vpop.f32.mrf.mxu0
    %v645 = vadd.f32 0.0, %v644
    %v646 = vpop.f32.mrf.mxu0
    %v647 = vpop.f32.mrf.mxu0
    %v648 = vadd.f32 0.0, %v647
    %v649 = vpop.f32.mrf.mxu0
    %650 = vmatprep.mubr.bf16.mxu0 0
    %651 = vmatmul.mubr.bf16.gmra.mxu0 %v554
    %v652 = vpop.f32.mrf.mxu0
    %v653 = vadd.f32 0.0, %v652
    %v654 = vpop.f32.mrf.mxu0
    %v655 = vpop.f32.mrf.mxu0
    %v656 = vadd.f32 0.0, %v655
    %v657 = vpop.f32.mrf.mxu0
    %658 = vmatprep.mubr.bf16.mxu0 0
    %659 = vmatmul.mubr.bf16.gmra.mxu0 %v557
    %v660 = vpop.f32.mrf.mxu0
    %v661 = vadd.f32 0.0, %v660
    %v662 = vpop.f32.mrf.mxu0
    %v663 = vpop.f32.mrf.mxu0
    %v664 = vadd.f32 0.0, %v663
    %v665 = vpop.f32.mrf.mxu0
    %666 = vmatprep.mubr.bf16.mxu0 0
    %667 = vmatmul.mubr.bf16.gmra.mxu0 %v560
    %v668 = vpop.f32.mrf.mxu0
    %v669 = vadd.f32 0.0, %v668
    %v670 = vpop.f32.mrf.mxu0
    %v671 = vpop.f32.mrf.mxu0
    %v672 = vadd.f32 0.0, %v671
    %v673 = vpop.f32.mrf.mxu0
    %674 = vdwg.mxu0
    %v675 = vmul.f32 %v597, %v597
    %v676 = vmul.f32 %v600, %v600
    %v677 = vmul.f32 %v605, %v605
    %v678 = vmul.f32 %v608, %v608
    %v679 = vmul.f32 %v613, %v613
    %v680 = vmul.f32 %v616, %v616
    %v681 = vmul.f32 %v621, %v621
    %v682 = vmul.f32 %v624, %v624
    %v683 = vmul.f32 %v597, %v613
    %v684 = vmul.f32 %v600, %v616
    %v685 = vmul.f32 %v605, %v621
    %v686 = vmul.f32 %v608, %v624
    %v687 = vsub.f32 %v629, %v675
    %v688 = vsub.f32 %v632, %v676
    %v689 = vsub.f32 %v637, %v677
    %v690 = vsub.f32 %v640, %v678
    %v691 = vsub.f32 %v645, %v679
    %v692 = vsub.f32 %v648, %v680
    %v693 = vsub.f32 %v653, %v681
    %v694 = vsub.f32 %v656, %v682
    %v695 = vsub.f32 %v661, %v683
    %v696 = vsub.f32 %v664, %v684
    %v697 = vsub.f32 %v669, %v685
    %v698 = vsub.f32 %v672, %v686
    %v699 = vmul.f32 %v683, 2.0
    %v700 = vmul.f32 %v684, 2.0
    %v701 = vmul.f32 %v685, 2.0
    %v702 = vmul.f32 %v686, 2.0
    %v703 = vadd.f32 %v699, 0.0001
    %v704 = vadd.f32 %v700, 0.0001
    %v705 = vadd.f32 %v701, 0.0001
    %v706 = vadd.f32 %v702, 0.0001
    %v707 = vmul.f32 %v695, 2.0
    %v708 = vmul.f32 %v696, 2.0
    %v709 = vmul.f32 %v697, 2.0
    %v710 = vmul.f32 %v698, 2.0
    %v711 = vadd.f32 %v707, 0.0009
    %v712 = vadd.f32 %v708, 0.0009
    %v713 = vadd.f32 %v709, 0.0009
    %v714 = vadd.f32 %v710, 0.0009
    %v715 = vmul.f32 %v703, %v711
    %v716 = vmul.f32 %v704, %v712
    %v717 = vmul.f32 %v705, %v713
    %v718 = vmul.f32 %v706, %v714
    %v719 = vadd.f32 %v675, %v679
    %v720 = vadd.f32 %v676, %v680
    %v721 = vadd.f32 %v677, %v681
    %v722 = vadd.f32 %v678, %v682
    %v723 = vadd.f32 %v719, 0.0001
    %v724 = vadd.f32 %v720, 0.0001
    %v725 = vadd.f32 %v721, 0.0001
    %v726 = vadd.f32 %v722, 0.0001
    %v727 = vadd.f32 %v687, %v691
    %v728 = vadd.f32 %v688, %v692
    %v729 = vadd.f32 %v689, %v693
    %v730 = vadd.f32 %v690, %v694
    %v731 = vadd.f32 %v727, 0.0009
    %v732 = vadd.f32 %v728, 0.0009
    %v733 = vadd.f32 %v729, 0.0009
    %v734 = vadd.f32 %v730, 0.0009
    %v735 = vmul.f32 %v723, %v731
    %v736 = vmul.f32 %v724, %v732
    %v737 = vmul.f32 %v725, %v733
    %v738 = vmul.f32 %v726, %v734
    %v739 = vrcp.pop %v735
    %v740 = vrcp.pop %v736
    %v741 = vrcp.pop %v737
    %v742 = vrcp.pop %v738
    %v743 = vmul.f32 %v715, %v739
    %v744 = vmul.f32 %v716, %v740
    %v745 = vmul.f32 %v717, %v741
    %v746 = vmul.f32 %v718, %v742
    %v747 = vsub.f32 1.0, %v743
    %v748 = vsub.f32 1.0, %v744
    %v749 = vsub.f32 1.0, %v745
    %v750 = vsub.f32 1.0, %v746
    %v751 = vmul.f32 %v747, 0.5
    %v752 = vmul.f32 %v748, 0.5
    %v753 = vmul.f32 %v749, 0.5
    %v754 = vmul.f32 %v750, 0.5
    %v755 = vmax.f32 %v751, 0.0
    %v756 = vmax.f32 %v752, 0.0
    %v757 = vmax.f32 %v753, 0.0
    %v758 = vmax.f32 %v754, 0.0
    %v759 = vmin.f32 %v755, 1.0
    %v760 = vmin.f32 %v756, 1.0
    %v761 = vmin.f32 %v757, 1.0
    %v762 = vmin.f32 %v758, 1.0
    %v763 = vsel %vm72, %v759, 0.0
    %v764 = vsel %vm72, %v760, 0.0
    %v765 = vadd.f32 %v763, %v764
    %v766 = vsel %vm72, %v761, 0.0
    %v767 = vadd.f32 %v765, %v766
    %v768 = vsel %vm72, %v762, 0.0
    %v769 = vadd.f32 %v767, %v768
    %770 = vadd.xlane.f32.xlu0 %v769
    %v771 = vpop.xlane.xlu0 %770
    %v772 = vrot.slane %v771, 4
    %v773 = vadd.f32 %v771, %v772
    %v774 = vrot.slane %v773, 2
    %v775 = vadd.f32 %v773, %v774
    %v776 = vrot.slane %v775, 1
    %v777 = vadd.f32 %v775, %v776
    %s778 = vtos %v777
    %v779 = vstv %s778
    %vm780 = vcmask 0
    %781 = vst.msk [vmem:[#allocation2] sm:$0x1] %vm780, %v779
    // Predicated region
    $region18: #{oh_my_loss.3} parent=1 // pred_check
      _
    $region19: #{oh_my_loss.3} parent=1 // pred_check_branch
      %783 = sbr.rel (0) target = $region21
    $region20: #{oh_my_loss.3} parent=1 // pred_region
      %s785 = ssub.s32 16, 16
      %786 = vsyncadd [#allocation3], %s785
      %s788 = sshll.u32 [#allocation2], 4
      %s789 = int_to_ptr.vmem [resolvable:$true] %s788
      %791 = dma.vmem_to_hbm [thread:$0]  %s789, 16, %s4, [#allocation3]
    $region21: #{oh_my_loss.3} parent=1 // pred_fallthru
      _
    // Predicated region
    $region22: #{oh_my_loss.3} parent=1 // pred_check
      _
    $region23: #{oh_my_loss.3} parent=1 // pred_check_branch
      %793 = sbr.rel (0) target = $region25
    $region24: #{oh_my_loss.3} parent=1 // pred_region
      %794 = dma.done [#allocation3], 16
    $region25: #{oh_my_loss.3} parent=1 // pred_fallthru
      _
    %795 = vsyncpa [#allocation3], 1

</llo_original>
